<compile_context>
chip_gen: v5e
topology: v5e:2x2
jax: 0.10.0
libtpu: 0.0.40
codegen_flags: <defaults>
</compile_context>

<pallas_src>
import numpy as np
import jax
import jax.numpy as jnp
from jax import lax
from jax.experimental import pallas as pl
from jax.experimental.pallas import tpu as pltpu

# --- small, module-consistent sizes -----------------------------------------
B, C, Hs, Ws = 2, 32, 4, 4          # in_channel = 32
N = Hs * Ws                          # tokens = H*W = 16
HEADS = 4
HEAD_DIM = C // HEADS                # 8 (== head_dim used for the scale)
G = B * HEADS                        # fused batch*head dim = 8
GN = G * N                           # flattened attention rows = 128
HIDDEN = C                           # FeedForward(dim, hidden_dim=in_channel)
OUT = 64                             # out_channel
OUT_PAD = 128                        # lane-dense padded output / slab width
SCALE = HEAD_DIM ** (-0.5)
NEG = -1.0e12                        # module's bernoulli additive value
NEG_BLOCK = -1.0e30                  # structural off-(batch,head)-block mask
LN_EPS = 1e-5

# constant-slab row offsets (all multiples of 8 -> sublane-aligned static slices)
MH_OFF = 0                  # [GN, C]       own-head 0/1 column mask
RT_OFF = MH_OFF + GN        # [B*N, GN]     head-merge matrix
AVG_OFF = RT_OFF + B * N    # [B, B*N]      per-batch token-mean matrix (8 rows reserved)
FF1_OFF = AVG_OFF + 8       # [B*N, HIDDEN] bernoulli mask 1
FF2_OFF = FF1_OFF + B * N   # [B*N, C]      bernoulli mask 2
AM_OFF = FF2_OFF + B * N    # [GN, GN]      additive attention mask (block-diag)
C_ROWS = AM_OFF + GN        # = 360 rows total


# --- in-kernel helpers --------------------------------------------------------
def _erf(x):
    # Abramowitz & Stegun 7.1.26 rational approximation (|err| < 1.5e-7);
    # divide done on the EUP via approx reciprocal (adds ~2^-12 rel err, fine
    # under the 1e-2 tolerance).  Keeps nn.GELU() (exact/erf) semantics.
    a1, a2, a3, a4, a5 = (0.254829592, -0.284496736, 1.421413741,
                          -1.453152027, 1.061405429)
    pc = 0.3275911
    sgn = jnp.where(x >= 0.0, 1.0, -1.0)
    ax = jnp.abs(x)
    t = pl.reciprocal(1.0 + pc * ax, approx=True)
    poly = t * (a1 + t * (a2 + t * (a3 + t * (a4 + t * a5))))
    return sgn * (1.0 - poly * jnp.exp(-ax * ax))


def _gelu_exact(x):
    return 0.5 * x * (1.0 + _erf(x * (1.0 / np.sqrt(2.0))))


def _normalize(h):
    # LayerNorm without affine (gamma/beta are folded into downstream weights).
    mu = jnp.mean(h, axis=-1, keepdims=True)
    var = jnp.mean(jnp.square(h - mu), axis=-1, keepdims=True)
    return (h - mu) * lax.rsqrt(var + LN_EPS)


# --- the Pallas kernel (no grid: whole problem in one invocation) --------------
def mha_kernel(x_ref, w_ref, b_ref, c_ref, out_ref):
    # slab accessors: 32-row weight blocks / single bias rows (static, aligned)
    def wblk(i, width=C):
        return w_ref[i * C:(i + 1) * C, :width]

    def bblk(i, width=C):
        return b_ref[i:i + 1, :width]

    xr = x_ref[...]                                                  # [GN, C] head-replicated tokens

    # Flat1D: 1x1 conv over channels == per-token linear, then LayerNorm
    z = jnp.dot(xr, wblk(0), preferred_element_type=jnp.float32) + bblk(0)
    h = _normalize(z)                                                # [GN, C]

    # Q/K/V in head-major flattened layout.  Rows are already (b, h, n) because
    # the wrapper replicated tokens per head; the constant 0/1 mask `mh` keeps
    # only each row's own-head channels in Q and V (one VPU multiply each).
    mh = c_ref[MH_OFF:MH_OFF + GN, :C]                               # [GN, C]
    q = (jnp.dot(h, wblk(1), preferred_element_type=jnp.float32) + bblk(1)) * mh
    k = jnp.dot(h, wblk(2), preferred_element_type=jnp.float32) + bblk(2)
    v = (jnp.dot(h, wblk(3), preferred_element_type=jnp.float32) + bblk(3)) * mh

    # One dense [GN, GN] score matrix.  Off-(batch,head) blocks are garbage and
    # are killed by the block-diagonal additive mask (which also carries the
    # module's bernoulli * -1e12 mask on the diagonal blocks).
    s = lax.dot_general(q, k, (((1,), (1,)), ((), ())),
                        preferred_element_type=jnp.float32)          # [GN, GN]
    s = s + c_ref[AM_OFF:AM_OFF + GN, :GN]
    s = s - jnp.max(s, axis=-1, keepdims=True)
    p = jnp.exp(s)
    p = p * pl.reciprocal(jnp.sum(p, axis=-1, keepdims=True), approx=True)

    obig = jnp.dot(p, v, preferred_element_type=jnp.float32)         # [GN, C] (own-head cols only)

    # Merge heads back to token-major [B*N, C] with a constant 0/1 matmul,
    # then the output projection.
    o = jnp.dot(c_ref[RT_OFF:RT_OFF + B * N, :GN], obig,
                preferred_element_type=jnp.float32)                  # [B*N, C]
    a = jnp.dot(o, wblk(4), preferred_element_type=jnp.float32) + bblk(4)

    # FeedForward with bernoulli * -1e12 perturbations
    h1 = jnp.dot(a, wblk(5), preferred_element_type=jnp.float32) + bblk(5)
    h1 = _gelu_exact(h1) + c_ref[FF1_OFF:FF1_OFF + B * N, :HIDDEN]
    f = jnp.dot(h1, wblk(6), preferred_element_type=jnp.float32) + bblk(6)
    f = f + c_ref[FF2_OFF:FF2_OFF + B * N, :C]

    # Final LayerNorm (affine folded into fc), per-batch token mean as a tiny
    # constant matmul, lane-dense padded fc.
    fn = _normalize(f)                                               # [B*N, C]
    m = jnp.dot(c_ref[AVG_OFF:AVG_OFF + B, :B * N], fn,
                preferred_element_type=jnp.float32)                  # [B, C]
    out_ref[...] = jnp.dot(m, wblk(7, OUT_PAD),
                           preferred_element_type=jnp.float32) + bblk(7, OUT_PAD)


# --- wrapper: weight folding + slab packing + pallas_call ----------------------
def mha_forward(x_nchw, params, masks):
    f32 = jnp.float32
    gamma, beta = params['gamma'], params['beta']          # [1, C] each
    gcol = gamma.reshape(C, 1)

    # Fold LN1 affine + attention scale into the Q/K/V projections, LN2 affine
    # into the final fc (per-channel affine commutes with the token mean).
    wq = params['wqkv'][:, :C];        bq = params['bqkv'][:, :C]
    wk = params['wqkv'][:, C:2 * C];   bk = params['bqkv'][:, C:2 * C]
    wv = params['wqkv'][:, 2 * C:];    bv = params['bqkv'][:, 2 * C:]
    wq_f, bq_f = (wq * gcol) * SCALE, (bq + beta @ wq) * SCALE
    wk_f, bk_f = (wk * gcol), (bk + beta @ wk)
    wv_f, bv_f = (wv * gcol), (bv + beta @ wv)
    wfc_f, bfc_f = (params['wfc'] * gcol), (params['bfc'] + beta @ params['wfc'])

    # --- slab 1: weights (8 blocks of 32 rows, lane-padded to 128) ------------
    w_list = [(params['wconv'], C), (wq_f, C), (wk_f, C), (wv_f, C),
              (params['wproj'], C), (params['wff1'], HIDDEN),
              (params['wff2'], C), (wfc_f, OUT)]
    w_slab = jnp.zeros((8 * C, OUT_PAD), f32)
    for i, (w, width) in enumerate(w_list):
        w_slab = w_slab.at[i * C:(i + 1) * C, :width].set(w.astype(f32))

    # --- slab 2: biases (one row per linear) ----------------------------------
    b_list = [(params['bconv'], C), (bq_f, C), (bk_f, C), (bv_f, C),
              (params['bproj'], C), (params['bff1'], HIDDEN),
              (params['bff2'], C), (bfc_f, OUT)]
    b_slab = jnp.zeros((8, OUT_PAD), f32)
    for i, (b, width) in enumerate(b_list):
        b_slab = b_slab.at[i, :width].set(b.reshape(-1).astype(f32))

    # --- slab 3: constants + bernoulli masks -----------------------------------
    rows = np.arange(GN)
    row_b, row_h, row_n = rows // (HEADS * N), (rows // N) % HEADS, rows % N
    mh_np = (row_h[:, None] == (np.arange(C) // HEAD_DIM)[None, :]).astype(np.float32)
    r = np.arange(B * N)
    rt_np = ((r[:, None] // N == row_b[None, :]) &
             (r[:, None] % N == row_n[None, :])).astype(np.float32)
    avg_np = np.zeros((B, B * N), np.float32)
    for b in range(B):
        avg_np[b, b * N:(b + 1) * N] = 1.0 / N

    attn_g = masks['attn'].reshape(G, N, N)
    amask = jnp.full((GN, GN), NEG_BLOCK, f32)        # kill cross-(batch,head) blocks
    for g in range(G):
        amask = amask.at[g * N:(g + 1) * N, g * N:(g + 1) * N].set(attn_g[g])

    c_slab = jnp.zeros((C_ROWS, OUT_PAD), f32)
    c_slab = c_slab.at[MH_OFF:MH_OFF + GN, :C].set(jnp.asarray(mh_np))
    c_slab = c_slab.at[RT_OFF:RT_OFF + B * N, :GN].set(jnp.asarray(rt_np))
    c_slab = c_slab.at[AVG_OFF:AVG_OFF + B, :B * N].set(jnp.asarray(avg_np))
    c_slab = c_slab.at[FF1_OFF:FF1_OFF + B * N, :HIDDEN].set(
        masks['ff1'].reshape(B * N, HIDDEN))
    c_slab = c_slab.at[FF2_OFF:FF2_OFF + B * N, :C].set(masks['ff2'].reshape(B * N, C))
    c_slab = c_slab.at[AM_OFF:AM_OFF + GN, :GN].set(amask)

    # --- slab 4: input tokens, replicated per head in (b, h, n) row order ------
    x_tok = x_nchw.reshape(B, C, N).transpose(0, 2, 1).astype(f32)    # [B, N, C]
    x_rep = jnp.broadcast_to(x_tok[:, None], (B, HEADS, N, C)).reshape(GN, C)

    fn = pl.pallas_call(
        mha_kernel,
        out_shape=jax.ShapeDtypeStruct((B, OUT_PAD), f32),
        in_specs=[pl.BlockSpec(memory_space=pltpu.MemorySpace.VMEM)] * 4,
        out_specs=pl.BlockSpec(memory_space=pltpu.MemorySpace.VMEM),
    )
    out_pad = fn(x_rep, w_slab, b_slab, c_slab)
    return out_pad[:, :OUT]


mha_forward = jax.jit(mha_forward)


# --- deterministic params / masks (synthetic, no checkpoint) -------------------
def init_params(key):
    ks = jax.random.split(key, 16)
    w = lambda k, shape, s=0.05: (s * jax.random.normal(k, shape)).astype(jnp.float32)
    return {
        'wconv': w(ks[0], (C, C)), 'bconv': w(ks[1], (1, C)),
        'gamma': (1.0 + 0.1 * jax.random.normal(ks[2], (1, C))).astype(jnp.float32),
        'beta':  w(ks[3], (1, C)),
        'wqkv':  w(ks[4], (C, 3 * C)), 'bqkv': w(ks[5], (1, 3 * C)),
        'wproj': w(ks[6], (C, C)), 'bproj': w(ks[7], (1, C)),
        'wff1':  w(ks[8], (C, HIDDEN)), 'bff1': w(ks[9], (1, HIDDEN)),
        'wff2':  w(ks[10], (HIDDEN, C)), 'bff2': w(ks[11], (1, C)),
        'wfc':   w(ks[12], (C, OUT)), 'bfc': w(ks[13], (1, OUT)),
    }


def make_masks(key):
    # TODO(synk): torch.bernoulli's RNG stream can't be reproduced bit-for-bit;
    # the same distributions are drawn with jax.random and fed to the kernel.
    k1, k2, k3 = jax.random.split(key, 3)
    attn = jnp.where(jax.random.bernoulli(k1, 0.5, (B, HEADS, N, N)), NEG, 0.0)
    ff1 = jnp.where(jax.random.bernoulli(k2, 0.3, (B, N, HIDDEN)), NEG, 0.0)
    ff2 = jnp.where(jax.random.bernoulli(k3, 0.1, (B, N, C)), NEG, 0.0)
    return {'attn': attn.astype(jnp.float32),
            'ff1': ff1.astype(jnp.float32),
            'ff2': ff2.astype(jnp.float32)}


# --- pure-JAX reference (mirrors the PyTorch forward) --------------------------
def ref_forward(x_nchw, params, masks):
    x = x_nchw.reshape(B, C, N).transpose(0, 2, 1)
    def ln(h):
        mu = jnp.mean(h, -1, keepdims=True)
        var = jnp.mean((h - mu) ** 2, -1, keepdims=True)
        return (h - mu) / jnp.sqrt(var + LN_EPS) * params['gamma'] + params['beta']
    h = ln(x @ params['wconv'] + params['bconv'])
    qkv = (h @ params['wqkv'] + params['bqkv']).reshape(B, N, 3, HEADS, HEAD_DIM)
    qkv = qkv.transpose(2, 0, 3, 1, 4)
    q, k, v = qkv[0], qkv[1], qkv[2]
    attn = jnp.einsum('bhnd,bhmd->bhnm', q, k) * SCALE + masks['attn']
    attn = jax.nn.softmax(attn, axis=-1)
    o = jnp.einsum('bhnm,bhmd->bhnd', attn, v).transpose(0, 2, 1, 3).reshape(B, N, C)
    a = o @ params['wproj'] + params['bproj']
    h1 = jax.nn.gelu(a @ params['wff1'] + params['bff1'], approximate=False)
    h1 = h1 + masks['ff1']
    f = h1 @ params['wff2'] + params['bff2'] + masks['ff2']
    f = ln(f)
    return f.mean(axis=1) @ params['wfc'] + params['bfc']


if __name__ == "__main__":
    key = jax.random.PRNGKey(0)
    kx, kp, km = jax.random.split(key, 3)
    x = jax.random.normal(kx, (B, C, Hs, Ws), dtype=jnp.float32)
    params = init_params(kp)
    masks = make_masks(km)

    out = mha_forward(x, params, masks)
    jax.block_until_ready(out)

    ref = ref_forward(x, params, masks)
    np.testing.assert_allclose(np.asarray(out), np.asarray(ref),
                               rtol=1e-2, atol=1e-2)
    print("KERNEL_OK")
</pallas_src>

<mosaic_0001>
module attributes {stable_mosaic.version = 11 : i64} {
  func.func @mha_kernel(%arg0: memref<128x32xf32, #tpu.memory_space<vmem>>, %arg1: memref<256x128xf32, #tpu.memory_space<vmem>>, %arg2: memref<8x128xf32, #tpu.memory_space<vmem>>, %arg3: memref<360x128xf32, #tpu.memory_space<vmem>>, %arg4: memref<2x128xf32, #tpu.memory_space<vmem>>) attributes {dimension_semantics = [], scalar_prefetch = 0 : i64, scratch_operands = 0 : i64, tpu.core_type = #tpu.core_type<tc>} {
    %c0 = arith.constant 0 : index
    %c0_0 = arith.constant 0 : index
    %0 = vector.load %arg0[%c0, %c0_0] : memref<128x32xf32, #tpu.memory_space<vmem>>, vector<128x32xf32>
    %c0_1 = arith.constant 0 : index
    %c0_2 = arith.constant 0 : index
    %1 = vector.load %arg1[%c0_1, %c0_2] : memref<256x128xf32, #tpu.memory_space<vmem>>, vector<32x32xf32>
    %cst = arith.constant dense<0.000000e+00> : vector<128x32xf32>
    %2 = tpu.matmul %0, %1, %cst {dimension_numbers = #tpu.dot_dimension_numbers<[1], [0], [0], [1], [0, 0, 1, 1], [], []>} : vector<128x32xf32>, vector<32x32xf32>, vector<128x32xf32> -> vector<128x32xf32>
    %c0_3 = arith.constant 0 : index
    %c0_4 = arith.constant 0 : index
    %3 = vector.load %arg2[%c0_3, %c0_4] : memref<8x128xf32, #tpu.memory_space<vmem>>, vector<1x32xf32>
    %4 = vector.broadcast %3 : vector<1x32xf32> to vector<128x32xf32>
    %5 = arith.addf %2, %4 : vector<128x32xf32>
    %cst_5 = arith.constant dense<0.000000e+00> : vector<128xf32>
    %6 = vector.multi_reduction <add>, %5, %cst_5 [1] : vector<128x32xf32> to vector<128xf32>
    %7 = vector.shape_cast %6 : vector<128xf32> to vector<128x1xf32>
    %cst_6 = arith.constant 3.200000e+01 : f32
    %8 = vector.broadcast %cst_6 : f32 to vector<128x1xf32>
    %9 = arith.divf %7, %8 : vector<128x1xf32>
    %10 = vector.broadcast %9 : vector<128x1xf32> to vector<128x32xf32>
    %11 = arith.subf %5, %10 : vector<128x32xf32>
    %12 = arith.mulf %11, %11 : vector<128x32xf32>
    %cst_7 = arith.constant dense<0.000000e+00> : vector<128xf32>
    %13 = vector.multi_reduction <add>, %12, %cst_7 [1] : vector<128x32xf32> to vector<128xf32>
    %14 = vector.shape_cast %13 : vector<128xf32> to vector<128x1xf32>
    %cst_8 = arith.constant 3.200000e+01 : f32
    %15 = vector.broadcast %cst_8 : f32 to vector<128x1xf32>
    %16 = arith.divf %14, %15 : vector<128x1xf32>
    %17 = vector.broadcast %9 : vector<128x1xf32> to vector<128x32xf32>
    %18 = arith.subf %5, %17 : vector<128x32xf32>
    %cst_9 = arith.constant 9.99999974E-6 : f32
    %19 = vector.broadcast %cst_9 : f32 to vector<128x1xf32>
    %20 = arith.addf %16, %19 : vector<128x1xf32>
    %21 = math.rsqrt %20 : vector<128x1xf32>
    %22 = vector.broadcast %21 : vector<128x1xf32> to vector<128x32xf32>
    %23 = arith.mulf %18, %22 : vector<128x32xf32>
    %c0_10 = arith.constant 0 : index
    %c0_11 = arith.constant 0 : index
    %24 = vector.load %arg3[%c0_10, %c0_11] : memref<360x128xf32, #tpu.memory_space<vmem>>, vector<128x32xf32>
    %c32 = arith.constant 32 : index
    %c0_12 = arith.constant 0 : index
    %25 = vector.load %arg1[%c32, %c0_12] : memref<256x128xf32, #tpu.memory_space<vmem>>, vector<32x32xf32>
    %cst_13 = arith.constant dense<0.000000e+00> : vector<128x32xf32>
    %26 = tpu.matmul %23, %25, %cst_13 {dimension_numbers = #tpu.dot_dimension_numbers<[1], [0], [0], [1], [0, 0, 1, 1], [], []>} : vector<128x32xf32>, vector<32x32xf32>, vector<128x32xf32> -> vector<128x32xf32>
    %c1 = arith.constant 1 : index
    %c0_14 = arith.constant 0 : index
    %27 = vector.load %arg2[%c1, %c0_14] : memref<8x128xf32, #tpu.memory_space<vmem>>, vector<1x32xf32>
    %28 = vector.broadcast %27 : vector<1x32xf32> to vector<128x32xf32>
    %29 = arith.addf %26, %28 : vector<128x32xf32>
    %30 = arith.mulf %29, %24 : vector<128x32xf32>
    %c64 = arith.constant 64 : index
    %c0_15 = arith.constant 0 : index
    %31 = vector.load %arg1[%c64, %c0_15] : memref<256x128xf32, #tpu.memory_space<vmem>>, vector<32x32xf32>
    %cst_16 = arith.constant dense<0.000000e+00> : vector<128x32xf32>
    %32 = tpu.matmul %23, %31, %cst_16 {dimension_numbers = #tpu.dot_dimension_numbers<[1], [0], [0], [1], [0, 0, 1, 1], [], []>} : vector<128x32xf32>, vector<32x32xf32>, vector<128x32xf32> -> vector<128x32xf32>
    %c2 = arith.constant 2 : index
    %c0_17 = arith.constant 0 : index
    %33 = vector.load %arg2[%c2, %c0_17] : memref<8x128xf32, #tpu.memory_space<vmem>>, vector<1x32xf32>
    %34 = vector.broadcast %33 : vector<1x32xf32> to vector<128x32xf32>
    %35 = arith.addf %32, %34 : vector<128x32xf32>
    %c96 = arith.constant 96 : index
    %c0_18 = arith.constant 0 : index
    %36 = vector.load %arg1[%c96, %c0_18] : memref<256x128xf32, #tpu.memory_space<vmem>>, vector<32x32xf32>
    %cst_19 = arith.constant dense<0.000000e+00> : vector<128x32xf32>
    %37 = tpu.matmul %23, %36, %cst_19 {dimension_numbers = #tpu.dot_dimension_numbers<[1], [0], [0], [1], [0, 0, 1, 1], [], []>} : vector<128x32xf32>, vector<32x32xf32>, vector<128x32xf32> -> vector<128x32xf32>
    %c3 = arith.constant 3 : index
    %c0_20 = arith.constant 0 : index
    %38 = vector.load %arg2[%c3, %c0_20] : memref<8x128xf32, #tpu.memory_space<vmem>>, vector<1x32xf32>
    %39 = vector.broadcast %38 : vector<1x32xf32> to vector<128x32xf32>
    %40 = arith.addf %37, %39 : vector<128x32xf32>
    %41 = arith.mulf %40, %24 : vector<128x32xf32>
    %cst_21 = arith.constant dense<0.000000e+00> : vector<128x128xf32>
    %42 = tpu.matmul %30, %35, %cst_21 {dimension_numbers = #tpu.dot_dimension_numbers<[1], [1], [0], [0], [0, 0, 1, 0], [], []>} : vector<128x32xf32>, vector<128x32xf32>, vector<128x128xf32> -> vector<128x128xf32>
    %c232 = arith.constant 232 : index
    %c0_22 = arith.constant 0 : index
    %43 = vector.load %arg3[%c232, %c0_22] : memref<360x128xf32, #tpu.memory_space<vmem>>, vector<128x128xf32>
    %44 = arith.addf %42, %43 : vector<128x128xf32>
    %cst_23 = arith.constant dense<0xFF800000> : vector<128xf32>
    %45 = vector.multi_reduction <maximumf>, %44, %cst_23 [1] : vector<128x128xf32> to vector<128xf32>
    %46 = vector.shape_cast %45 : vector<128xf32> to vector<128x1xf32>
    %47 = vector.broadcast %46 : vector<128x1xf32> to vector<128x128xf32>
    %48 = arith.subf %44, %47 : vector<128x128xf32>
    %49 = math.exp %48 : vector<128x128xf32>
    %cst_24 = arith.constant dense<0.000000e+00> : vector<128xf32>
    %50 = vector.multi_reduction <add>, %49, %cst_24 [1] : vector<128x128xf32> to vector<128xf32>
    %51 = vector.shape_cast %50 : vector<128xf32> to vector<128x1xf32>
    %52 = tpu.reciprocal %51 {approx = true} : vector<128x1xf32> -> vector<128x1xf32>
    %53 = vector.broadcast %52 : vector<128x1xf32> to vector<128x128xf32>
    %54 = arith.mulf %49, %53 : vector<128x128xf32>
    %cst_25 = arith.constant dense<0.000000e+00> : vector<128x32xf32>
    %55 = tpu.matmul %54, %41, %cst_25 {dimension_numbers = #tpu.dot_dimension_numbers<[1], [0], [0], [1], [0, 0, 1, 1], [], []>} : vector<128x128xf32>, vector<128x32xf32>, vector<128x32xf32> -> vector<128x32xf32>
    %c128 = arith.constant 128 : index
    %c0_26 = arith.constant 0 : index
    %56 = vector.load %arg3[%c128, %c0_26] : memref<360x128xf32, #tpu.memory_space<vmem>>, vector<32x128xf32>
    %cst_27 = arith.constant dense<0.000000e+00> : vector<32x32xf32>
    %57 = tpu.matmul %56, %55, %cst_27 {dimension_numbers = #tpu.dot_dimension_numbers<[1], [0], [0], [1], [0, 0, 1, 1], [], []>} : vector<32x128xf32>, vector<128x32xf32>, vector<32x32xf32> -> vector<32x32xf32>
    %c128_28 = arith.constant 128 : index
    %c0_29 = arith.constant 0 : index
    %58 = vector.load %arg1[%c128_28, %c0_29] : memref<256x128xf32, #tpu.memory_space<vmem>>, vector<32x32xf32>
    %cst_30 = arith.constant dense<0.000000e+00> : vector<32x32xf32>
    %59 = tpu.matmul %57, %58, %cst_30 {dimension_numbers = #tpu.dot_dimension_numbers<[1], [0], [0], [1], [0, 0, 1, 1], [], []>} : vector<32x32xf32>, vector<32x32xf32>, vector<32x32xf32> -> vector<32x32xf32>
    %c4 = arith.constant 4 : index
    %c0_31 = arith.constant 0 : index
    %60 = vector.load %arg2[%c4, %c0_31] : memref<8x128xf32, #tpu.memory_space<vmem>>, vector<1x32xf32>
    %61 = vector.broadcast %60 : vector<1x32xf32> to vector<32x32xf32>
    %62 = arith.addf %59, %61 : vector<32x32xf32>
    %c160 = arith.constant 160 : index
    %c0_32 = arith.constant 0 : index
    %63 = vector.load %arg1[%c160, %c0_32] : memref<256x128xf32, #tpu.memory_space<vmem>>, vector<32x32xf32>
    %cst_33 = arith.constant dense<0.000000e+00> : vector<32x32xf32>
    %64 = tpu.matmul %62, %63, %cst_33 {dimension_numbers = #tpu.dot_dimension_numbers<[1], [0], [0], [1], [0, 0, 1, 1], [], []>} : vector<32x32xf32>, vector<32x32xf32>, vector<32x32xf32> -> vector<32x32xf32>
    %c5 = arith.constant 5 : index
    %c0_34 = arith.constant 0 : index
    %65 = vector.load %arg2[%c5, %c0_34] : memref<8x128xf32, #tpu.memory_space<vmem>>, vector<1x32xf32>
    %66 = vector.broadcast %65 : vector<1x32xf32> to vector<32x32xf32>
    %67 = arith.addf %64, %66 : vector<32x32xf32>
    %cst_35 = arith.constant 5.000000e-01 : f32
    %68 = vector.broadcast %cst_35 : f32 to vector<32x32xf32>
    %69 = arith.mulf %68, %67 : vector<32x32xf32>
    %cst_36 = arith.constant 0.707106769 : f32
    %70 = vector.broadcast %cst_36 : f32 to vector<32x32xf32>
    %71 = arith.mulf %67, %70 : vector<32x32xf32>
    %cst_37 = arith.constant 0.000000e+00 : f32
    %72 = vector.broadcast %cst_37 : f32 to vector<32x32xf32>
    %73 = arith.cmpf oge, %71, %72 : vector<32x32xf32>
    %cst_38 = arith.constant 1.000000e+00 : f32
    %cst_39 = arith.constant -1.000000e+00 : f32
    %74 = vector.broadcast %cst_38 : f32 to vector<32x32xf32>
    %75 = vector.broadcast %cst_39 : f32 to vector<32x32xf32>
    %76 = arith.select %73, %74, %75 : vector<32x32xi1>, vector<32x32xf32>
    %77 = math.absf %71 : vector<32x32xf32>
    %cst_40 = arith.constant 0.327591091 : f32
    %78 = vector.broadcast %cst_40 : f32 to vector<32x32xf32>
    %79 = arith.mulf %78, %77 : vector<32x32xf32>
    %cst_41 = arith.constant 1.000000e+00 : f32
    %80 = vector.broadcast %cst_41 : f32 to vector<32x32xf32>
    %81 = arith.addf %80, %79 : vector<32x32xf32>
    %82 = tpu.reciprocal %81 {approx = true} : vector<32x32xf32> -> vector<32x32xf32>
    %cst_42 = arith.constant 1.06140542 : f32
    %83 = vector.broadcast %cst_42 : f32 to vector<32x32xf32>
    %84 = arith.mulf %82, %83 : vector<32x32xf32>
    %cst_43 = arith.constant -1.45315206 : f32
    %85 = vector.broadcast %cst_43 : f32 to vector<32x32xf32>
    %86 = arith.addf %85, %84 : vector<32x32xf32>
    %87 = arith.mulf %82, %86 : vector<32x32xf32>
    %cst_44 = arith.constant 1.42141378 : f32
    %88 = vector.broadcast %cst_44 : f32 to vector<32x32xf32>
    %89 = arith.addf %88, %87 : vector<32x32xf32>
    %90 = arith.mulf %82, %89 : vector<32x32xf32>
    %cst_45 = arith.constant -0.284496725 : f32
    %91 = vector.broadcast %cst_45 : f32 to vector<32x32xf32>
    %92 = arith.addf %91, %90 : vector<32x32xf32>
    %93 = arith.mulf %82, %92 : vector<32x32xf32>
    %cst_46 = arith.constant 0.254829586 : f32
    %94 = vector.broadcast %cst_46 : f32 to vector<32x32xf32>
    %95 = arith.addf %94, %93 : vector<32x32xf32>
    %96 = arith.mulf %82, %95 : vector<32x32xf32>
    %cst_47 = arith.constant 0.000000e+00 : f32
    %97 = vector.broadcast %cst_47 : f32 to vector<32x32xf32>
    %98 = arith.subf %97, %77 : vector<32x32xf32>
    %99 = arith.mulf %98, %77 : vector<32x32xf32>
    %100 = math.exp %99 : vector<32x32xf32>
    %101 = arith.mulf %96, %100 : vector<32x32xf32>
    %cst_48 = arith.constant 1.000000e+00 : f32
    %102 = vector.broadcast %cst_48 : f32 to vector<32x32xf32>
    %103 = arith.subf %102, %101 : vector<32x32xf32>
    %104 = arith.mulf %76, %103 : vector<32x32xf32>
    %cst_49 = arith.constant 1.000000e+00 : f32
    %105 = vector.broadcast %cst_49 : f32 to vector<32x32xf32>
    %106 = arith.addf %105, %104 : vector<32x32xf32>
    %107 = arith.mulf %69, %106 : vector<32x32xf32>
    %c168 = arith.constant 168 : index
    %c0_50 = arith.constant 0 : index
    %108 = vector.load %arg3[%c168, %c0_50] : memref<360x128xf32, #tpu.memory_space<vmem>>, vector<32x32xf32>
    %109 = arith.addf %107, %108 : vector<32x32xf32>
    %c192 = arith.constant 192 : index
    %c0_51 = arith.constant 0 : index
    %110 = vector.load %arg1[%c192, %c0_51] : memref<256x128xf32, #tpu.memory_space<vmem>>, vector<32x32xf32>
    %cst_52 = arith.constant dense<0.000000e+00> : vector<32x32xf32>
    %111 = tpu.matmul %109, %110, %cst_52 {dimension_numbers = #tpu.dot_dimension_numbers<[1], [0], [0], [1], [0, 0, 1, 1], [], []>} : vector<32x32xf32>, vector<32x32xf32>, vector<32x32xf32> -> vector<32x32xf32>
    %c6 = arith.constant 6 : index
    %c0_53 = arith.constant 0 : index
    %112 = vector.load %arg2[%c6, %c0_53] : memref<8x128xf32, #tpu.memory_space<vmem>>, vector<1x32xf32>
    %113 = vector.broadcast %112 : vector<1x32xf32> to vector<32x32xf32>
    %114 = arith.addf %111, %113 : vector<32x32xf32>
    %c200 = arith.constant 200 : index
    %c0_54 = arith.constant 0 : index
    %115 = vector.load %arg3[%c200, %c0_54] : memref<360x128xf32, #tpu.memory_space<vmem>>, vector<32x32xf32>
    %116 = arith.addf %114, %115 : vector<32x32xf32>
    %cst_55 = arith.constant dense<0.000000e+00> : vector<32xf32>
    %117 = vector.multi_reduction <add>, %116, %cst_55 [1] : vector<32x32xf32> to vector<32xf32>
    %118 = vector.shape_cast %117 : vector<32xf32> to vector<32x1xf32>
    %cst_56 = arith.constant 3.200000e+01 : f32
    %119 = vector.broadcast %cst_56 : f32 to vector<32x1xf32>
    %120 = arith.divf %118, %119 : vector<32x1xf32>
    %121 = vector.broadcast %120 : vector<32x1xf32> to vector<32x32xf32>
    %122 = arith.subf %116, %121 : vector<32x32xf32>
    %123 = arith.mulf %122, %122 : vector<32x32xf32>
    %cst_57 = arith.constant dense<0.000000e+00> : vector<32xf32>
    %124 = vector.multi_reduction <add>, %123, %cst_57 [1] : vector<32x32xf32> to vector<32xf32>
    %125 = vector.shape_cast %124 : vector<32xf32> to vector<32x1xf32>
    %cst_58 = arith.constant 3.200000e+01 : f32
    %126 = vector.broadcast %cst_58 : f32 to vector<32x1xf32>
    %127 = arith.divf %125, %126 : vector<32x1xf32>
    %128 = vector.broadcast %120 : vector<32x1xf32> to vector<32x32xf32>
    %129 = arith.subf %116, %128 : vector<32x32xf32>
    %cst_59 = arith.constant 9.99999974E-6 : f32
    %130 = vector.broadcast %cst_59 : f32 to vector<32x1xf32>
    %131 = arith.addf %127, %130 : vector<32x1xf32>
    %132 = math.rsqrt %131 : vector<32x1xf32>
    %133 = vector.broadcast %132 : vector<32x1xf32> to vector<32x32xf32>
    %134 = arith.mulf %129, %133 : vector<32x32xf32>
    %c160_60 = arith.constant 160 : index
    %c0_61 = arith.constant 0 : index
    %135 = vector.load %arg3[%c160_60, %c0_61] : memref<360x128xf32, #tpu.memory_space<vmem>>, vector<2x32xf32>
    %cst_62 = arith.constant dense<0.000000e+00> : vector<2x32xf32>
    %136 = tpu.matmul %135, %134, %cst_62 {dimension_numbers = #tpu.dot_dimension_numbers<[1], [0], [0], [1], [0, 0, 1, 1], [], []>} : vector<2x32xf32>, vector<32x32xf32>, vector<2x32xf32> -> vector<2x32xf32>
    %c224 = arith.constant 224 : index
    %c0_63 = arith.constant 0 : index
    %137 = vector.load %arg1[%c224, %c0_63] : memref<256x128xf32, #tpu.memory_space<vmem>>, vector<32x128xf32>
    %cst_64 = arith.constant dense<0.000000e+00> : vector<2x128xf32>
    %138 = tpu.matmul %136, %137, %cst_64 {dimension_numbers = #tpu.dot_dimension_numbers<[1], [0], [0], [1], [0, 0, 1, 1], [], []>} : vector<2x32xf32>, vector<32x128xf32>, vector<2x128xf32> -> vector<2x128xf32>
    %c7 = arith.constant 7 : index
    %c0_65 = arith.constant 0 : index
    %139 = vector.load %arg2[%c7, %c0_65] : memref<8x128xf32, #tpu.memory_space<vmem>>, vector<1x128xf32>
    %140 = vector.broadcast %139 : vector<1x128xf32> to vector<2x128xf32>
    %141 = arith.addf %138, %140 : vector<2x128xf32>
    %c0_66 = arith.constant 0 : index
    %c0_67 = arith.constant 0 : index
    %142 = vector.load %arg4[%c0_66, %c0_67] : memref<2x128xf32, #tpu.memory_space<vmem>>, vector<2x128xf32>
    tpu.vector_store %arg4[%c0_66, %c0_67], %141 {strides = array<i32>} : memref<2x128xf32, #tpu.memory_space<vmem>>, vector<2x128xf32>,
    return
  }
}

</mosaic_0001>

<llo_original>
// kernel: mha_forward.1
$region0: #{mha_forward.1}
  #allocation0 [shape = 'u32[]', space=smem, size = 0x4, offset = 0x4, fixed_abs, tag = 'smem constant byte address 0x4 - core index']
  #allocation1 [shape = 'u32[72,128]{1,0:T(1,128)}', space=vmem, size = 0x9000, scoped, tag = 'internal scratch']
  %s0 = inlined_call_operand.vmem [shape: f32[128,32], index: 0, kind: input, shape index: {}]
  %s1 = inlined_call_operand.vmem [shape: f32[256,128], index: 1, kind: input, shape index: {}]
  %s2 = inlined_call_operand.vmem [shape: f32[8,128], index: 2, kind: input, shape index: {}]
  %s3 = inlined_call_operand.vmem [shape: f32[360,128], index: 3, kind: input, shape index: {}]
  %s4 = inlined_call_operand.hbm [shape: f32[2,128], index: 4, kind: output, shape index: {}]
  %s5 = sld [smem:[#allocation0]]
  $region26: #{mha_forward.1} parent=0
    _
  %s7 = ssub.s32 1, %s5
  %s8 = scalar_select 0, %s7, %s5
  $region1: #{mha_forward.1} parent=0
    #allocation2 [shape = 'u8[1024]{0}', space=vmem, size = 0x400, scoped, tag = 'output window, operand 0, single buffered']
    #allocation3 [shape = 's32[1]{0}', space=sflag, size = 0x4, scoped, tag = 'scoped memory for mha_forward.1']
    %9 = vsyncpa [#allocation3], 0
    // Predicated region
    $region2: #{mha_forward.1} parent=1 // pred_check
      _
    $region3: #{mha_forward.1} parent=1 // pred_check_branch
      %11 = sbr.rel (0) target = $region5
    $region4: #{mha_forward.1} parent=1 // pred_region
      _
    $region5: #{mha_forward.1} parent=1 // pred_fallthru
      _
    // Predicated region
    $region6: #{mha_forward.1} parent=1 // pred_check
      _
    $region7: #{mha_forward.1} parent=1 // pred_check_branch
      %13 = sbr.rel (0) target = $region9
    $region8: #{mha_forward.1} parent=1 // pred_region
      _
    $region9: #{mha_forward.1} parent=1 // pred_fallthru
      _
    // Predicated region
    $region10: #{mha_forward.1} parent=1 // pred_check
      _
    $region11: #{mha_forward.1} parent=1 // pred_check_branch
      %15 = sbr.rel (0) target = $region13
    $region12: #{mha_forward.1} parent=1 // pred_region
      _
    $region13: #{mha_forward.1} parent=1 // pred_fallthru
      _
    // Predicated region
    $region14: #{mha_forward.1} parent=1 // pred_check
      _
    $region15: #{mha_forward.1} parent=1 // pred_check_branch
      %17 = sbr.rel (0) target = $region17
    $region16: #{mha_forward.1} parent=1 // pred_region
      _
    $region17: #{mha_forward.1} parent=1 // pred_fallthru
      _
    %v18 = vld [vmem:[%s0] sm:$0xff]
    %v19 = vld [vmem:[%s0 + $0x8] sm:$0xff]
    %v20 = vld [vmem:[%s0 + $0x10] sm:$0xff]
    %v21 = vld [vmem:[%s0 + $0x18] sm:$0xff]
    %v22 = vld [vmem:[%s0 + $0x20] sm:$0xff]
    %v23 = vld [vmem:[%s0 + $0x28] sm:$0xff]
    %v24 = vld [vmem:[%s0 + $0x30] sm:$0xff]
    %v25 = vld [vmem:[%s0 + $0x38] sm:$0xff]
    %v26 = vld [vmem:[%s0 + $0x40] sm:$0xff]
    %v27 = vld [vmem:[%s0 + $0x48] sm:$0xff]
    %v28 = vld [vmem:[%s0 + $0x50] sm:$0xff]
    %v29 = vld [vmem:[%s0 + $0x58] sm:$0xff]
    %v30 = vld [vmem:[%s0 + $0x60] sm:$0xff]
    %v31 = vld [vmem:[%s0 + $0x68] sm:$0xff]
    %v32 = vld [vmem:[%s0 + $0x70] sm:$0xff]
    %v33 = vld [vmem:[%s0 + $0x78] sm:$0xff]
    %v34 = vld [vmem:[%s1] sm:$0xff]
    %v35 = vld [vmem:[%s1 + $0x8] sm:$0xff]
    %v36 = vld [vmem:[%s1 + $0x10] sm:$0xff]
    %v37 = vld [vmem:[%s1 + $0x18] sm:$0xff]
    %v38 = vld [vmem:[%s2] sm:$0x1]
    %v39 = vperm.slane %v38, 0
    %vm40 = vcmask 261120
    %v42 = vsel %vm40, %v18, 0
    %v45 = vsel %vm40, %v19, 0
    %v48 = vsel %vm40, %v20, 0
    %v51 = vsel %vm40, %v21, 0
    %v54 = vsel %vm40, %v22, 0
    %v57 = vsel %vm40, %v23, 0
    %v60 = vsel %vm40, %v24, 0
    %v63 = vsel %vm40, %v25, 0
    %v66 = vsel %vm40, %v26, 0
    %v69 = vsel %vm40, %v27, 0
    %v72 = vsel %vm40, %v28, 0
    %v75 = vsel %vm40, %v29, 0
    %v78 = vsel %vm40, %v30, 0
    %v81 = vsel %vm40, %v31, 0
    %v84 = vsel %vm40, %v32, 0
    %v87 = vsel %vm40, %v33, 0
    %89 = vmatpush.msra.mxu0 0.0
    %90 = vmatpush.msra.mxu0 0.0
    %91 = vmatpush.msra.mxu0 0.0
    %92 = vmatpush.msra.mxu0 0.0
    %93 = vmatpush.msra.mxu0 0.0
    %94 = vmatpush.msra.mxu0 0.0
    %95 = vmatpush.msra.mxu0 0.0
    %96 = vmatpush.msra.mxu0 0.0
    %97 = vmatpush.msra.mxu0 0.0
    %98 = vmatpush.msra.mxu0 0.0
    %99 = vmatpush.msra.mxu0 0.0
    %100 = vmatpush.msra.mxu0 0.0
    %101 = vmatpush.msra.mxu0 %v37
    %102 = vmatpush.msra.mxu0 %v36
    %103 = vmatpush.msra.mxu0 %v35
    %104 = vmatpush.msra.mxu0 %v34
    %105 = vmatmul.f32.gmra.mxu0 %v42
    %v106 = vpop.f32.mrf.mxu0
    %v107 = vadd.f32 %v39, %v106
    %108 = vmatmul.f32.gmra.mxu0 %v45
    %v109 = vpop.f32.mrf.mxu0
    %v110 = vadd.f32 %v39, %v109
    %111 = vmatmul.f32.gmra.mxu0 %v48
    %v112 = vpop.f32.mrf.mxu0
    %v113 = vadd.f32 %v39, %v112
    %114 = vmatmul.f32.gmra.mxu0 %v51
    %v115 = vpop.f32.mrf.mxu0
    %v116 = vadd.f32 %v39, %v115
    %117 = vmatmul.f32.gmra.mxu0 %v54
    %v118 = vpop.f32.mrf.mxu0
    %v119 = vadd.f32 %v39, %v118
    %120 = vmatmul.f32.gmra.mxu0 %v57
    %v121 = vpop.f32.mrf.mxu0
    %v122 = vadd.f32 %v39, %v121
    %123 = vmatmul.f32.gmra.mxu0 %v60
    %v124 = vpop.f32.mrf.mxu0
    %v125 = vadd.f32 %v39, %v124
    %126 = vmatmul.f32.gmra.mxu0 %v63
    %v127 = vpop.f32.mrf.mxu0
    %v128 = vadd.f32 %v39, %v127
    %129 = vmatmul.f32.gmra.mxu0 %v66
    %v130 = vpop.f32.mrf.mxu0
    %v131 = vadd.f32 %v39, %v130
    %132 = vmatmul.f32.gmra.mxu0 %v69
    %v133 = vpop.f32.mrf.mxu0
    %v134 = vadd.f32 %v39, %v133
    %135 = vmatmul.f32.gmra.mxu0 %v72
    %v136 = vpop.f32.mrf.mxu0
    %v137 = vadd.f32 %v39, %v136
    %138 = vmatmul.f32.gmra.mxu0 %v75
    %v139 = vpop.f32.mrf.mxu0
    %v140 = vadd.f32 %v39, %v139
    %141 = vmatmul.f32.gmra.mxu0 %v78
    %v142 = vpop.f32.mrf.mxu0
    %v143 = vadd.f32 %v39, %v142
    %144 = vmatmul.f32.gmra.mxu0 %v81
    %v145 = vpop.f32.mrf.mxu0
    %v146 = vadd.f32 %v39, %v145
    %147 = vmatmul.f32.gmra.mxu0 %v84
    %v148 = vpop.f32.mrf.mxu0
    %v149 = vadd.f32 %v39, %v148
    %150 = vmatmul.f32.gmra.mxu0 %v87
    %v151 = vpop.f32.mrf.mxu0
    %v152 = vadd.f32 %v39, %v151
    %153 = vdwg.mxu0
    %v154 = vsel %vm40, %v107, 0.0
    %155 = vadd.xlane.f32.xlu0 %v154
    %v156 = vpop.xlane.xlu0 %155
    %v157 = vsel %vm40, %v110, 0.0
    %158 = vadd.xlane.f32.xlu0 %v157
    %v159 = vpop.xlane.xlu0 %158
    %v160 = vsel %vm40, %v113, 0.0
    %161 = vadd.xlane.f32.xlu0 %v160
    %v162 = vpop.xlane.xlu0 %161
    %v163 = vsel %vm40, %v116, 0.0
    %164 = vadd.xlane.f32.xlu0 %v163
    %v165 = vpop.xlane.xlu0 %164
    %v166 = vsel %vm40, %v119, 0.0
    %167 = vadd.xlane.f32.xlu0 %v166
    %v168 = vpop.xlane.xlu0 %167
    %v169 = vsel %vm40, %v122, 0.0
    %170 = vadd.xlane.f32.xlu0 %v169
    %v171 = vpop.xlane.xlu0 %170
    %v172 = vsel %vm40, %v125, 0.0
    %173 = vadd.xlane.f32.xlu0 %v172
    %v174 = vpop.xlane.xlu0 %173
    %v175 = vsel %vm40, %v128, 0.0
    %176 = vadd.xlane.f32.xlu0 %v175
    %v177 = vpop.xlane.xlu0 %176
    %v178 = vsel %vm40, %v131, 0.0
    %179 = vadd.xlane.f32.xlu0 %v178
    %v180 = vpop.xlane.xlu0 %179
    %v181 = vsel %vm40, %v134, 0.0
    %182 = vadd.xlane.f32.xlu0 %v181
    %v183 = vpop.xlane.xlu0 %182
    %v184 = vsel %vm40, %v137, 0.0
    %185 = vadd.xlane.f32.xlu0 %v184
    %v186 = vpop.xlane.xlu0 %185
    %v187 = vsel %vm40, %v140, 0.0
    %188 = vadd.xlane.f32.xlu0 %v187
    %v189 = vpop.xlane.xlu0 %188
    %v190 = vsel %vm40, %v143, 0.0
    %191 = vadd.xlane.f32.xlu0 %v190
    %v192 = vpop.xlane.xlu0 %191
    %v193 = vsel %vm40, %v146, 0.0
    %194 = vadd.xlane.f32.xlu0 %v193
    %v195 = vpop.xlane.xlu0 %194
    %v196 = vsel %vm40, %v149, 0.0
    %197 = vadd.xlane.f32.xlu0 %v196
    %v198 = vpop.xlane.xlu0 %197
    %v199 = vsel %vm40, %v152, 0.0
    %200 = vadd.xlane.f32.xlu0 %v199
    %v201 = vpop.xlane.xlu0 %200
    %v202 = vrcp.pop 32.0
    %v203 = vmul.f32 32.0, %v202
    %v204 = vsub.f32 1.0, %v203
    %v205 = vmul.f32 %v202, %v204
    %v206 = vadd.f32 %v202, %v205
    %vm207 = vweird.f32 %v202
    %v208 = vsel %vm207, %v202, %v206
    %v209 = vmul.f32 %v156, %v208
    %v210 = vmul.f32 %v159, %v208
    %v211 = vmul.f32 %v162, %v208
    %v212 = vmul.f32 %v165, %v208
    %v213 = vmul.f32 %v168, %v208
    %v214 = vmul.f32 %v171, %v208
    %v215 = vmul.f32 %v174, %v208
    %v216 = vmul.f32 %v177, %v208
    %v217 = vmul.f32 %v180, %v208
    %v218 = vmul.f32 %v183, %v208
    %v219 = vmul.f32 %v186, %v208
    %v220 = vmul.f32 %v189, %v208
    %v221 = vmul.f32 %v192, %v208
    %v222 = vmul.f32 %v195, %v208
    %v223 = vmul.f32 %v198, %v208
    %v224 = vmul.f32 %v201, %v208
    %v225 = vsub.f32 %v107, %v209
    %v226 = vsub.f32 %v110, %v210
    %v227 = vsub.f32 %v113, %v211
    %v228 = vsub.f32 %v116, %v212
    %v229 = vsub.f32 %v119, %v213
    %v230 = vsub.f32 %v122, %v214
    %v231 = vsub.f32 %v125, %v215
    %v232 = vsub.f32 %v128, %v216
    %v233 = vsub.f32 %v131, %v217
    %v234 = vsub.f32 %v134, %v218
    %v235 = vsub.f32 %v137, %v219
    %v236 = vsub.f32 %v140, %v220
    %v237 = vsub.f32 %v143, %v221
    %v238 = vsub.f32 %v146, %v222
    %v239 = vsub.f32 %v149, %v223
    %v240 = vsub.f32 %v152, %v224
    %v241 = vmul.f32 %v225, %v225
    %v242 = vmul.f32 %v226, %v226
    %v243 = vmul.f32 %v227, %v227
    %v244 = vmul.f32 %v228, %v228
    %v245 = vmul.f32 %v229, %v229
    %v246 = vmul.f32 %v230, %v230
    %v247 = vmul.f32 %v231, %v231
    %v248 = vmul.f32 %v232, %v232
    %v249 = vmul.f32 %v233, %v233
    %v250 = vmul.f32 %v234, %v234
    %v251 = vmul.f32 %v235, %v235
    %v252 = vmul.f32 %v236, %v236
    %v253 = vmul.f32 %v237, %v237
    %v254 = vmul.f32 %v238, %v238
    %v255 = vmul.f32 %v239, %v239
    %v256 = vmul.f32 %v240, %v240
    %v257 = vsel %vm40, %v241, 0.0
    %258 = vadd.xlane.f32.xlu0 %v257
    %v259 = vpop.xlane.xlu0 %258
    %v260 = vsel %vm40, %v242, 0.0
    %261 = vadd.xlane.f32.xlu0 %v260
    %v262 = vpop.xlane.xlu0 %261
    %v263 = vsel %vm40, %v243, 0.0
    %264 = vadd.xlane.f32.xlu0 %v263
    %v265 = vpop.xlane.xlu0 %264
    %v266 = vsel %vm40, %v244, 0.0
    %267 = vadd.xlane.f32.xlu0 %v266
    %v268 = vpop.xlane.xlu0 %267
    %v269 = vsel %vm40, %v245, 0.0
    %270 = vadd.xlane.f32.xlu0 %v269
    %v271 = vpop.xlane.xlu0 %270
    %v272 = vsel %vm40, %v246, 0.0
    %273 = vadd.xlane.f32.xlu0 %v272
    %v274 = vpop.xlane.xlu0 %273
    %v275 = vsel %vm40, %v247, 0.0
    %276 = vadd.xlane.f32.xlu0 %v275
    %v277 = vpop.xlane.xlu0 %276
    %v278 = vsel %vm40, %v248, 0.0
    %279 = vadd.xlane.f32.xlu0 %v278
    %v280 = vpop.xlane.xlu0 %279
    %v281 = vsel %vm40, %v249, 0.0
    %282 = vadd.xlane.f32.xlu0 %v281
    %v283 = vpop.xlane.xlu0 %282
    %v284 = vsel %vm40, %v250, 0.0
    %285 = vadd.xlane.f32.xlu0 %v284
    %v286 = vpop.xlane.xlu0 %285
    %v287 = vsel %vm40, %v251, 0.0
    %288 = vadd.xlane.f32.xlu0 %v287
    %v289 = vpop.xlane.xlu0 %288
    %v290 = vsel %vm40, %v252, 0.0
    %291 = vadd.xlane.f32.xlu0 %v290
    %v292 = vpop.xlane.xlu0 %291
    %v293 = vsel %vm40, %v253, 0.0
    %294 = vadd.xlane.f32.xlu0 %v293
    %v295 = vpop.xlane.xlu0 %294
    %v296 = vsel %vm40, %v254, 0.0
    %297 = vadd.xlane.f32.xlu0 %v296
    %v298 = vpop.xlane.xlu0 %297
    %v299 = vsel %vm40, %v255, 0.0
    %300 = vadd.xlane.f32.xlu0 %v299
    %v301 = vpop.xlane.xlu0 %300
    %v302 = vsel %vm40, %v256, 0.0
    %303 = vadd.xlane.f32.xlu0 %v302
    %v304 = vpop.xlane.xlu0 %303
    %v305 = vmul.f32 %v259, %v208
    %v306 = vmul.f32 %v262, %v208
    %v307 = vmul.f32 %v265, %v208
    %v308 = vmul.f32 %v268, %v208
    %v309 = vmul.f32 %v271, %v208
    %v310 = vmul.f32 %v274, %v208
    %v311 = vmul.f32 %v277, %v208
    %v312 = vmul.f32 %v280, %v208
    %v313 = vmul.f32 %v283, %v208
    %v314 = vmul.f32 %v286, %v208
    %v315 = vmul.f32 %v289, %v208
    %v316 = vmul.f32 %v292, %v208
    %v317 = vmul.f32 %v295, %v208
    %v318 = vmul.f32 %v298, %v208
    %v319 = vmul.f32 %v301, %v208
    %v320 = vmul.f32 %v304, %v208
    %v321 = vadd.f32 %v305, 1e-05
    %v322 = vadd.f32 %v306, 1e-05
    %v323 = vadd.f32 %v307, 1e-05
    %v324 = vadd.f32 %v308, 1e-05
    %v325 = vadd.f32 %v309, 1e-05
    %v326 = vadd.f32 %v310, 1e-05
    %v327 = vadd.f32 %v311, 1e-05
    %v328 = vadd.f32 %v312, 1e-05
    %v329 = vadd.f32 %v313, 1e-05
    %v330 = vadd.f32 %v314, 1e-05
    %v331 = vadd.f32 %v315, 1e-05
    %v332 = vadd.f32 %v316, 1e-05
    %v333 = vadd.f32 %v317, 1e-05
    %v334 = vadd.f32 %v318, 1e-05
    %v335 = vadd.f32 %v319, 1e-05
    %v336 = vadd.f32 %v320, 1e-05
    %v337 = vrsqrt.pop %v321
    %v338 = vmul.f32 %v337, %v321
    %v339 = vmul.f32 %v338, %v337
    %v340 = vmul.f32 0.5, %v339
    %v341 = vsub.f32 1.5, %v340
    %v342 = vmul.f32 %v337, %v341
    %vm343 = vweird.f32 %v321
    %vm344 = vweird.f32 %v337
    %vm345 = vmor %vm343, %vm344
    %v346 = vsel %vm345, %v337, %v342
    %v347 = vrsqrt.pop %v322
    %v348 = vmul.f32 %v347, %v322
    %v349 = vmul.f32 %v348, %v347
    %v350 = vmul.f32 0.5, %v349
    %v351 = vsub.f32 1.5, %v350
    %v352 = vmul.f32 %v347, %v351
    %vm353 = vweird.f32 %v322
    %vm354 = vweird.f32 %v347
    %vm355 = vmor %vm353, %vm354
    %v356 = vsel %vm355, %v347, %v352
    %v357 = vrsqrt.pop %v323
    %v358 = vmul.f32 %v357, %v323
    %v359 = vmul.f32 %v358, %v357
    %v360 = vmul.f32 0.5, %v359
    %v361 = vsub.f32 1.5, %v360
    %v362 = vmul.f32 %v357, %v361
    %vm363 = vweird.f32 %v323
    %vm364 = vweird.f32 %v357
    %vm365 = vmor %vm363, %vm364
    %v366 = vsel %vm365, %v357, %v362
    %v367 = vrsqrt.pop %v324
    %v368 = vmul.f32 %v367, %v324
    %v369 = vmul.f32 %v368, %v367
    %v370 = vmul.f32 0.5, %v369
    %v371 = vsub.f32 1.5, %v370
    %v372 = vmul.f32 %v367, %v371
    %vm373 = vweird.f32 %v324
    %vm374 = vweird.f32 %v367
    %vm375 = vmor %vm373, %vm374
    %v376 = vsel %vm375, %v367, %v372
    %v377 = vrsqrt.pop %v325
    %v378 = vmul.f32 %v377, %v325
    %v379 = vmul.f32 %v378, %v377
    %v380 = vmul.f32 0.5, %v379
    %v381 = vsub.f32 1.5, %v380
    %v382 = vmul.f32 %v377, %v381
    %vm383 = vweird.f32 %v325
    %vm384 = vweird.f32 %v377
    %vm385 = vmor %vm383, %vm384
    %v386 = vsel %vm385, %v377, %v382
    %v387 = vrsqrt.pop %v326
    %v388 = vmul.f32 %v387, %v326
    %v389 = vmul.f32 %v388, %v387
    %v390 = vmul.f32 0.5, %v389
    %v391 = vsub.f32 1.5, %v390
    %v392 = vmul.f32 %v387, %v391
    %vm393 = vweird.f32 %v326
    %vm394 = vweird.f32 %v387
    %vm395 = vmor %vm393, %vm394
    %v396 = vsel %vm395, %v387, %v392
    %v397 = vrsqrt.pop %v327
    %v398 = vmul.f32 %v397, %v327
    %v399 = vmul.f32 %v398, %v397
    %v400 = vmul.f32 0.5, %v399
    %v401 = vsub.f32 1.5, %v400
    %v402 = vmul.f32 %v397, %v401
    %vm403 = vweird.f32 %v327
    %vm404 = vweird.f32 %v397
    %vm405 = vmor %vm403, %vm404
    %v406 = vsel %vm405, %v397, %v402
    %v407 = vrsqrt.pop %v328
    %v408 = vmul.f32 %v407, %v328
    %v409 = vmul.f32 %v408, %v407
    %v410 = vmul.f32 0.5, %v409
    %v411 = vsub.f32 1.5, %v410
    %v412 = vmul.f32 %v407, %v411
    %vm413 = vweird.f32 %v328
    %vm414 = vweird.f32 %v407
    %vm415 = vmor %vm413, %vm414
    %v416 = vsel %vm415, %v407, %v412
    %v417 = vrsqrt.pop %v329
    %v418 = vmul.f32 %v417, %v329
    %v419 = vmul.f32 %v418, %v417
    %v420 = vmul.f32 0.5, %v419
    %v421 = vsub.f32 1.5, %v420
    %v422 = vmul.f32 %v417, %v421
    %vm423 = vweird.f32 %v329
    %vm424 = vweird.f32 %v417
    %vm425 = vmor %vm423, %vm424
    %v426 = vsel %vm425, %v417, %v422
    %v427 = vrsqrt.pop %v330
    %v428 = vmul.f32 %v427, %v330
    %v429 = vmul.f32 %v428, %v427
    %v430 = vmul.f32 0.5, %v429
    %v431 = vsub.f32 1.5, %v430
    %v432 = vmul.f32 %v427, %v431
    %vm433 = vweird.f32 %v330
    %vm434 = vweird.f32 %v427
    %vm435 = vmor %vm433, %vm434
    %v436 = vsel %vm435, %v427, %v432
    %v437 = vrsqrt.pop %v331
    %v438 = vmul.f32 %v437, %v331
    %v439 = vmul.f32 %v438, %v437
    %v440 = vmul.f32 0.5, %v439
    %v441 = vsub.f32 1.5, %v440
    %v442 = vmul.f32 %v437, %v441
    %vm443 = vweird.f32 %v331
    %vm444 = vweird.f32 %v437
    %vm445 = vmor %vm443, %vm444
    %v446 = vsel %vm445, %v437, %v442
    %v447 = vrsqrt.pop %v332
    %v448 = vmul.f32 %v447, %v332
    %v449 = vmul.f32 %v448, %v447
    %v450 = vmul.f32 0.5, %v449
    %v451 = vsub.f32 1.5, %v450
    %v452 = vmul.f32 %v447, %v451
    %vm453 = vweird.f32 %v332
    %vm454 = vweird.f32 %v447
    %vm455 = vmor %vm453, %vm454
    %v456 = vsel %vm455, %v447, %v452
    %v457 = vrsqrt.pop %v333
    %v458 = vmul.f32 %v457, %v333
    %v459 = vmul.f32 %v458, %v457
    %v460 = vmul.f32 0.5, %v459
    %v461 = vsub.f32 1.5, %v460
    %v462 = vmul.f32 %v457, %v461
    %vm463 = vweird.f32 %v333
    %vm464 = vweird.f32 %v457
    %vm465 = vmor %vm463, %vm464
    %v466 = vsel %vm465, %v457, %v462
    %v467 = vrsqrt.pop %v334
    %v468 = vmul.f32 %v467, %v334
    %v469 = vmul.f32 %v468, %v467
    %v470 = vmul.f32 0.5, %v469
    %v471 = vsub.f32 1.5, %v470
    %v472 = vmul.f32 %v467, %v471
    %vm473 = vweird.f32 %v334
    %vm474 = vweird.f32 %v467
    %vm475 = vmor %vm473, %vm474
    %v476 = vsel %vm475, %v467, %v472
    %v477 = vrsqrt.pop %v335
    %v478 = vmul.f32 %v477, %v335
    %v479 = vmul.f32 %v478, %v477
    %v480 = vmul.f32 0.5, %v479
    %v481 = vsub.f32 1.5, %v480
    %v482 = vmul.f32 %v477, %v481
    %vm483 = vweird.f32 %v335
    %vm484 = vweird.f32 %v477
    %vm485 = vmor %vm483, %vm484
    %v486 = vsel %vm485, %v477, %v482
    %v487 = vrsqrt.pop %v336
    %v488 = vmul.f32 %v487, %v336
    %v489 = vmul.f32 %v488, %v487
    %v490 = vmul.f32 0.5, %v489
    %v491 = vsub.f32 1.5, %v490
    %v492 = vmul.f32 %v487, %v491
    %vm493 = vweird.f32 %v336
    %vm494 = vweird.f32 %v487
    %vm495 = vmor %vm493, %vm494
    %v496 = vsel %vm495, %v487, %v492
    %v497 = vmul.f32 %v225, %v346
    %v498 = vmul.f32 %v226, %v356
    %v499 = vmul.f32 %v227, %v366
    %v500 = vmul.f32 %v228, %v376
    %v501 = vmul.f32 %v229, %v386
    %v502 = vmul.f32 %v230, %v396
    %v503 = vmul.f32 %v231, %v406
    %v504 = vmul.f32 %v232, %v416
    %v505 = vmul.f32 %v233, %v426
    %v506 = vmul.f32 %v234, %v436
    %v507 = vmul.f32 %v235, %v446
    %v508 = vmul.f32 %v236, %v456
    %v509 = vmul.f32 %v237, %v466
    %v510 = vmul.f32 %v238, %v476
    %v511 = vmul.f32 %v239, %v486
    %v512 = vmul.f32 %v240, %v496
    %v513 = vld [vmem:[%s3] sm:$0xff]
    %v514 = vld [vmem:[%s3 + $0x8] sm:$0xff]
    %v515 = vld [vmem:[%s3 + $0x10] sm:$0xff]
    %v516 = vld [vmem:[%s3 + $0x18] sm:$0xff]
    %v517 = vld [vmem:[%s3 + $0x20] sm:$0xff]
    %v518 = vld [vmem:[%s3 + $0x28] sm:$0xff]
    %v519 = vld [vmem:[%s3 + $0x30] sm:$0xff]
    %v520 = vld [vmem:[%s3 + $0x38] sm:$0xff]
    %v521 = vld [vmem:[%s3 + $0x40] sm:$0xff]
    %v522 = vld [vmem:[%s3 + $0x48] sm:$0xff]
    %v523 = vld [vmem:[%s3 + $0x50] sm:$0xff]
    %v524 = vld [vmem:[%s3 + $0x58] sm:$0xff]
    %v525 = vld [vmem:[%s3 + $0x60] sm:$0xff]
    %v526 = vld [vmem:[%s3 + $0x68] sm:$0xff]
    %v527 = vld [vmem:[%s3 + $0x70] sm:$0xff]
    %v528 = vld [vmem:[%s3 + $0x78] sm:$0xff]
    %v529 = vld [vmem:[%s1 + $0x20] sm:$0xff]
    %v530 = vld [vmem:[%s1 + $0x28] sm:$0xff]
    %v531 = vld [vmem:[%s1 + $0x30] sm:$0xff]
    %v532 = vld [vmem:[%s1 + $0x38] sm:$0xff]
    %v533 = vld [vmem:[%s2 + $0x1] sm:$0x1]
    %v534 = vperm.slane %v533, 0
    %v536 = vsel %vm40, %v497, 0
    %v539 = vsel %vm40, %v498, 0
    %v542 = vsel %vm40, %v499, 0
    %v545 = vsel %vm40, %v500, 0
    %v548 = vsel %vm40, %v501, 0
    %v551 = vsel %vm40, %v502, 0
    %v554 = vsel %vm40, %v503, 0
    %v557 = vsel %vm40, %v504, 0
    %v560 = vsel %vm40, %v505, 0
    %v563 = vsel %vm40, %v506, 0
    %v566 = vsel %vm40, %v507, 0
    %v569 = vsel %vm40, %v508, 0
    %v572 = vsel %vm40, %v509, 0
    %v575 = vsel %vm40, %v510, 0
    %v578 = vsel %vm40, %v511, 0
    %v581 = vsel %vm40, %v512, 0
    %583 = vmatpush.msra.mxu0 0.0
    %584 = vmatpush.msra.mxu0 0.0
    %585 = vmatpush.msra.mxu0 0.0
    %586 = vmatpush.msra.mxu0 0.0
    %587 = vmatpush.msra.mxu0 0.0
    %588 = vmatpush.msra.mxu0 0.0
    %589 = vmatpush.msra.mxu0 0.0
    %590 = vmatpush.msra.mxu0 0.0
    %591 = vmatpush.msra.mxu0 0.0
    %592 = vmatpush.msra.mxu0 0.0
    %593 = vmatpush.msra.mxu0 0.0
    %594 = vmatpush.msra.mxu0 0.0
    %595 = vmatpush.msra.mxu0 %v532
    %596 = vmatpush.msra.mxu0 %v531
    %597 = vmatpush.msra.mxu0 %v530
    %598 = vmatpush.msra.mxu0 %v529
    %599 = vmatmul.f32.gmra.mxu0 %v536
    %v600 = vpop.f32.mrf.mxu0
    %v601 = vadd.f32 %v534, %v600
    %602 = vmatmul.f32.gmra.mxu0 %v539
    %v603 = vpop.f32.mrf.mxu0
    %v604 = vadd.f32 %v534, %v603
    %605 = vmatmul.f32.gmra.mxu0 %v542
    %v606 = vpop.f32.mrf.mxu0
    %v607 = vadd.f32 %v534, %v606
    %608 = vmatmul.f32.gmra.mxu0 %v545
    %v609 = vpop.f32.mrf.mxu0
    %v610 = vadd.f32 %v534, %v609
    %611 = vmatmul.f32.gmra.mxu0 %v548
    %v612 = vpop.f32.mrf.mxu0
    %v613 = vadd.f32 %v534, %v612
    %614 = vmatmul.f32.gmra.mxu0 %v551
    %v615 = vpop.f32.mrf.mxu0
    %v616 = vadd.f32 %v534, %v615
    %617 = vmatmul.f32.gmra.mxu0 %v554
    %v618 = vpop.f32.mrf.mxu0
    %v619 = vadd.f32 %v534, %v618
    %620 = vmatmul.f32.gmra.mxu0 %v557
    %v621 = vpop.f32.mrf.mxu0
    %v622 = vadd.f32 %v534, %v621
    %623 = vmatmul.f32.gmra.mxu0 %v560
    %v624 = vpop.f32.mrf.mxu0
    %v625 = vadd.f32 %v534, %v624
    %626 = vmatmul.f32.gmra.mxu0 %v563
    %v627 = vpop.f32.mrf.mxu0
    %v628 = vadd.f32 %v534, %v627
    %629 = vmatmul.f32.gmra.mxu0 %v566
    %v630 = vpop.f32.mrf.mxu0
    %v631 = vadd.f32 %v534, %v630
    %632 = vmatmul.f32.gmra.mxu0 %v569
    %v633 = vpop.f32.mrf.mxu0
    %v634 = vadd.f32 %v534, %v633
    %635 = vmatmul.f32.gmra.mxu0 %v572
    %v636 = vpop.f32.mrf.mxu0
    %v637 = vadd.f32 %v534, %v636
    %638 = vmatmul.f32.gmra.mxu0 %v575
    %v639 = vpop.f32.mrf.mxu0
    %v640 = vadd.f32 %v534, %v639
    %641 = vmatmul.f32.gmra.mxu0 %v578
    %v642 = vpop.f32.mrf.mxu0
    %v643 = vadd.f32 %v534, %v642
    %644 = vmatmul.f32.gmra.mxu0 %v581
    %v645 = vpop.f32.mrf.mxu0
    %v646 = vadd.f32 %v534, %v645
    %647 = vdwg.mxu0
    %v648 = vmul.f32 %v601, %v513
    %v649 = vmul.f32 %v604, %v514
    %v650 = vmul.f32 %v607, %v515
    %v651 = vmul.f32 %v610, %v516
    %v652 = vmul.f32 %v613, %v517
    %v653 = vmul.f32 %v616, %v518
    %v654 = vmul.f32 %v619, %v519
    %v655 = vmul.f32 %v622, %v520
    %v656 = vmul.f32 %v625, %v521
    %v657 = vmul.f32 %v628, %v522
    %v658 = vmul.f32 %v631, %v523
    %v659 = vmul.f32 %v634, %v524
    %v660 = vmul.f32 %v637, %v525
    %v661 = vmul.f32 %v640, %v526
    %v662 = vmul.f32 %v643, %v527
    %v663 = vmul.f32 %v646, %v528
    %v664 = vld [vmem:[%s1 + $0x40] sm:$0xff]
    %v665 = vld [vmem:[%s1 + $0x48] sm:$0xff]
    %v666 = vld [vmem:[%s1 + $0x50] sm:$0xff]
    %v667 = vld [vmem:[%s1 + $0x58] sm:$0xff]
    %v668 = vld [vmem:[%s2 + $0x2] sm:$0x1]
    %v669 = vperm.slane %v668, 0
    %670 = vmatpush.msra.mxu0 0.0
    %671 = vmatpush.msra.mxu0 0.0
    %672 = vmatpush.msra.mxu0 0.0
    %673 = vmatpush.msra.mxu0 0.0
    %674 = vmatpush.msra.mxu0 0.0
    %675 = vmatpush.msra.mxu0 0.0
    %676 = vmatpush.msra.mxu0 0.0
    %677 = vmatpush.msra.mxu0 0.0
    %678 = vmatpush.msra.mxu0 0.0
    %679 = vmatpush.msra.mxu0 0.0
    %680 = vmatpush.msra.mxu0 0.0
    %681 = vmatpush.msra.mxu0 0.0
    %682 = vmatpush.msra.mxu0 %v667
    %683 = vmatpush.msra.mxu0 %v666
    %684 = vmatpush.msra.mxu0 %v665
    %685 = vmatpush.msra.mxu0 %v664
    %686 = vmatmul.f32.gmra.mxu0 %v536
    %v687 = vpop.f32.mrf.mxu0
    %v688 = vadd.f32 %v669, %v687
    %689 = vmatmul.f32.gmra.mxu0 %v539
    %v690 = vpop.f32.mrf.mxu0
    %v691 = vadd.f32 %v669, %v690
    %692 = vmatmul.f32.gmra.mxu0 %v542
    %v693 = vpop.f32.mrf.mxu0
    %v694 = vadd.f32 %v669, %v693
    %695 = vmatmul.f32.gmra.mxu0 %v545
    %v696 = vpop.f32.mrf.mxu0
    %v697 = vadd.f32 %v669, %v696
    %698 = vmatmul.f32.gmra.mxu0 %v548
    %v699 = vpop.f32.mrf.mxu0
    %v700 = vadd.f32 %v669, %v699
    %701 = vmatmul.f32.gmra.mxu0 %v551
    %v702 = vpop.f32.mrf.mxu0
    %v703 = vadd.f32 %v669, %v702
    %704 = vmatmul.f32.gmra.mxu0 %v554
    %v705 = vpop.f32.mrf.mxu0
    %v706 = vadd.f32 %v669, %v705
    %707 = vmatmul.f32.gmra.mxu0 %v557
    %v708 = vpop.f32.mrf.mxu0
    %v709 = vadd.f32 %v669, %v708
    %710 = vmatmul.f32.gmra.mxu0 %v560
    %v711 = vpop.f32.mrf.mxu0
    %v712 = vadd.f32 %v669, %v711
    %713 = vmatmul.f32.gmra.mxu0 %v563
    %v714 = vpop.f32.mrf.mxu0
    %v715 = vadd.f32 %v669, %v714
    %716 = vmatmul.f32.gmra.mxu0 %v566
    %v717 = vpop.f32.mrf.mxu0
    %v718 = vadd.f32 %v669, %v717
    %719 = vmatmul.f32.gmra.mxu0 %v569
    %v720 = vpop.f32.mrf.mxu0
    %v721 = vadd.f32 %v669, %v720
    %722 = vmatmul.f32.gmra.mxu0 %v572
    %v723 = vpop.f32.mrf.mxu0
    %v724 = vadd.f32 %v669, %v723
    %725 = vmatmul.f32.gmra.mxu0 %v575
    %v726 = vpop.f32.mrf.mxu0
    %v727 = vadd.f32 %v669, %v726
    %728 = vmatmul.f32.gmra.mxu0 %v578
    %v729 = vpop.f32.mrf.mxu0
    %v730 = vadd.f32 %v669, %v729
    %731 = vmatmul.f32.gmra.mxu0 %v581
    %v732 = vpop.f32.mrf.mxu0
    %v733 = vadd.f32 %v669, %v732
    %734 = vdwg.mxu0
    %v735 = vld [vmem:[%s1 + $0x60] sm:$0xff]
    %v736 = vld [vmem:[%s1 + $0x68] sm:$0xff]
    %v737 = vld [vmem:[%s1 + $0x70] sm:$0xff]
    %v738 = vld [vmem:[%s1 + $0x78] sm:$0xff]
    %v739 = vld [vmem:[%s2 + $0x3] sm:$0x1]
    %v740 = vperm.slane %v739, 0
    %741 = vmatpush.msra.mxu0 0.0
    %742 = vmatpush.msra.mxu0 0.0
    %743 = vmatpush.msra.mxu0 0.0
    %744 = vmatpush.msra.mxu0 0.0
    %745 = vmatpush.msra.mxu0 0.0
    %746 = vmatpush.msra.mxu0 0.0
    %747 = vmatpush.msra.mxu0 0.0
    %748 = vmatpush.msra.mxu0 0.0
    %749 = vmatpush.msra.mxu0 0.0
    %750 = vmatpush.msra.mxu0 0.0
    %751 = vmatpush.msra.mxu0 0.0
    %752 = vmatpush.msra.mxu0 0.0
    %753 = vmatpush.msra.mxu0 %v738
    %754 = vmatpush.msra.mxu0 %v737
    %755 = vmatpush.msra.mxu0 %v736
    %756 = vmatpush.msra.mxu0 %v735
    %757 = vmatmul.f32.gmra.mxu0 %v536
    %v758 = vpop.f32.mrf.mxu0
    %v759 = vadd.f32 %v740, %v758
    %760 = vmatmul.f32.gmra.mxu0 %v539
    %v761 = vpop.f32.mrf.mxu0
    %v762 = vadd.f32 %v740, %v761
    %763 = vmatmul.f32.gmra.mxu0 %v542
    %v764 = vpop.f32.mrf.mxu0
    %v765 = vadd.f32 %v740, %v764
    %766 = vmatmul.f32.gmra.mxu0 %v545
    %v767 = vpop.f32.mrf.mxu0
    %v768 = vadd.f32 %v740, %v767
    %769 = vmatmul.f32.gmra.mxu0 %v548
    %v770 = vpop.f32.mrf.mxu0
    %v771 = vadd.f32 %v740, %v770
    %772 = vmatmul.f32.gmra.mxu0 %v551
    %v773 = vpop.f32.mrf.mxu0
    %v774 = vadd.f32 %v740, %v773
    %775 = vmatmul.f32.gmra.mxu0 %v554
    %v776 = vpop.f32.mrf.mxu0
    %v777 = vadd.f32 %v740, %v776
    %778 = vmatmul.f32.gmra.mxu0 %v557
    %v779 = vpop.f32.mrf.mxu0
    %v780 = vadd.f32 %v740, %v779
    %781 = vmatmul.f32.gmra.mxu0 %v560
    %v782 = vpop.f32.mrf.mxu0
    %v783 = vadd.f32 %v740, %v782
    %784 = vmatmul.f32.gmra.mxu0 %v563
    %v785 = vpop.f32.mrf.mxu0
    %v786 = vadd.f32 %v740, %v785
    %787 = vmatmul.f32.gmra.mxu0 %v566
    %v788 = vpop.f32.mrf.mxu0
    %v789 = vadd.f32 %v740, %v788
    %790 = vmatmul.f32.gmra.mxu0 %v569
    %v791 = vpop.f32.mrf.mxu0
    %v792 = vadd.f32 %v740, %v791
    %793 = vmatmul.f32.gmra.mxu0 %v572
    %v794 = vpop.f32.mrf.mxu0
    %v795 = vadd.f32 %v740, %v794
    %796 = vmatmul.f32.gmra.mxu0 %v575
    %v797 = vpop.f32.mrf.mxu0
    %v798 = vadd.f32 %v740, %v797
    %799 = vmatmul.f32.gmra.mxu0 %v578
    %v800 = vpop.f32.mrf.mxu0
    %v801 = vadd.f32 %v740, %v800
    %802 = vmatmul.f32.gmra.mxu0 %v581
    %v803 = vpop.f32.mrf.mxu0
    %v804 = vadd.f32 %v740, %v803
    %805 = vdwg.mxu0
    %v806 = vmul.f32 %v759, %v513
    %v807 = vmul.f32 %v762, %v514
    %v808 = vmul.f32 %v765, %v515
    %v809 = vmul.f32 %v768, %v516
    %v810 = vmul.f32 %v771, %v517
    %v811 = vmul.f32 %v774, %v518
    %v812 = vmul.f32 %v777, %v519
    %v813 = vmul.f32 %v780, %v520
    %v814 = vmul.f32 %v783, %v521
    %v815 = vmul.f32 %v786, %v522
    %v816 = vmul.f32 %v789, %v523
    %v817 = vmul.f32 %v792, %v524
    %v818 = vmul.f32 %v795, %v525
    %v819 = vmul.f32 %v798, %v526
    %v820 = vmul.f32 %v801, %v527
    %v821 = vmul.f32 %v804, %v528
    %v822 = vld [vmem:[%s3 + $0xe8] sm:$0xff]
    %v823 = vld [vmem:[%s3 + $0xf0] sm:$0xff]
    %v824 = vld [vmem:[%s3 + $0xf8] sm:$0xff]
    %v825 = vld [vmem:[%s3 + $0x100] sm:$0xff]
    %v826 = vld [vmem:[%s3 + $0x108] sm:$0xff]
    %v827 = vld [vmem:[%s3 + $0x110] sm:$0xff]
    %v828 = vld [vmem:[%s3 + $0x118] sm:$0xff]
    %v829 = vld [vmem:[%s3 + $0x120] sm:$0xff]
    %v830 = vld [vmem:[%s3 + $0x128] sm:$0xff]
    %v831 = vld [vmem:[%s3 + $0x130] sm:$0xff]
    %v832 = vld [vmem:[%s3 + $0x138] sm:$0xff]
    %v833 = vld [vmem:[%s3 + $0x140] sm:$0xff]
    %v834 = vld [vmem:[%s3 + $0x148] sm:$0xff]
    %v835 = vld [vmem:[%s3 + $0x150] sm:$0xff]
    %v836 = vld [vmem:[%s3 + $0x158] sm:$0xff]
    %v837 = vld [vmem:[%s3 + $0x160] sm:$0xff]
    %v839 = vsel %vm40, %v648, 0
    %v842 = vsel %vm40, %v649, 0
    %v845 = vsel %vm40, %v650, 0
    %v848 = vsel %vm40, %v651, 0
    %v851 = vsel %vm40, %v652, 0
    %v854 = vsel %vm40, %v653, 0
    %v857 = vsel %vm40, %v654, 0
    %v860 = vsel %vm40, %v655, 0
    %v863 = vsel %vm40, %v656, 0
    %v866 = vsel %vm40, %v657, 0
    %v869 = vsel %vm40, %v658, 0
    %v872 = vsel %vm40, %v659, 0
    %v875 = vsel %vm40, %v660, 0
    %v878 = vsel %vm40, %v661, 0
    %v881 = vsel %vm40, %v662, 0
    %v884 = vsel %vm40, %v663, 0
    %v887 = vsel %vm40, %v688, 0
    %v890 = vsel %vm40, %v691, 0
    %v893 = vsel %vm40, %v694, 0
    %v896 = vsel %vm40, %v697, 0
    %v899 = vsel %vm40, %v700, 0
    %v902 = vsel %vm40, %v703, 0
    %v905 = vsel %vm40, %v706, 0
    %v908 = vsel %vm40, %v709, 0
    %v911 = vsel %vm40, %v712, 0
    %v914 = vsel %vm40, %v715, 0
    %v917 = vsel %vm40, %v718, 0
    %v920 = vsel %vm40, %v721, 0
    %v923 = vsel %vm40, %v724, 0
    %v926 = vsel %vm40, %v727, 0
    %v929 = vsel %vm40, %v730, 0
    %v932 = vsel %vm40, %v733, 0
    %934 = vmatpush.xpose.msra.mxu0 %v932
    %935 = vmatpush.xpose.msra.mxu0 %v929
    %936 = vmatpush.xpose.msra.mxu0 %v926
    %937 = vmatpush.xpose.msra.mxu0 %v923
    %938 = vmatpush.xpose.msra.mxu0 %v920
    %939 = vmatpush.xpose.msra.mxu0 %v917
    %940 = vmatpush.xpose.msra.mxu0 %v914
    %941 = vmatpush.xpose.msra.mxu0 %v911
    %942 = vmatpush.xpose.msra.mxu0 %v908
    %943 = vmatpush.xpose.msra.mxu0 %v905
    %944 = vmatpush.xpose.msra.mxu0 %v902
    %945 = vmatpush.xpose.msra.mxu0 %v899
    %946 = vmatpush.xpose.msra.mxu0 %v896
    %947 = vmatpush.xpose.msra.mxu0 %v893
    %948 = vmatpush.xpose.msra.mxu0 %v890
    %949 = vmatpush.xpose.msra.mxu0 %v887
    %950 = vmatmul.f32.gmra.mxu0 %v839
    %v951 = vpop.f32.mrf.mxu0
    %v952 = vadd.f32 %v822, %v951
    %953 = vmatmul.f32.gmra.mxu0 %v842
    %v954 = vpop.f32.mrf.mxu0
    %v955 = vadd.f32 %v823, %v954
    %956 = vmatmul.f32.gmra.mxu0 %v845
    %v957 = vpop.f32.mrf.mxu0
    %v958 = vadd.f32 %v824, %v957
    %959 = vmatmul.f32.gmra.mxu0 %v848
    %v960 = vpop.f32.mrf.mxu0
    %v961 = vadd.f32 %v825, %v960
    %962 = vmatmul.f32.gmra.mxu0 %v851
    %v963 = vpop.f32.mrf.mxu0
    %v964 = vadd.f32 %v826, %v963
    %965 = vmatmul.f32.gmra.mxu0 %v854
    %v966 = vpop.f32.mrf.mxu0
    %v967 = vadd.f32 %v827, %v966
    %968 = vmatmul.f32.gmra.mxu0 %v857
    %v969 = vpop.f32.mrf.mxu0
    %v970 = vadd.f32 %v828, %v969
    %971 = vmatmul.f32.gmra.mxu0 %v860
    %v972 = vpop.f32.mrf.mxu0
    %v973 = vadd.f32 %v829, %v972
    %974 = vmatmul.f32.gmra.mxu0 %v863
    %v975 = vpop.f32.mrf.mxu0
    %v976 = vadd.f32 %v830, %v975
    %977 = vmatmul.f32.gmra.mxu0 %v866
    %v978 = vpop.f32.mrf.mxu0
    %v979 = vadd.f32 %v831, %v978
    %980 = vmatmul.f32.gmra.mxu0 %v869
    %v981 = vpop.f32.mrf.mxu0
    %v982 = vadd.f32 %v832, %v981
    %983 = vmatmul.f32.gmra.mxu0 %v872
    %v984 = vpop.f32.mrf.mxu0
    %v985 = vadd.f32 %v833, %v984
    %986 = vmatmul.f32.gmra.mxu0 %v875
    %v987 = vpop.f32.mrf.mxu0
    %v988 = vadd.f32 %v834, %v987
    %989 = vmatmul.f32.gmra.mxu0 %v878
    %v990 = vpop.f32.mrf.mxu0
    %v991 = vadd.f32 %v835, %v990
    %992 = vmatmul.f32.gmra.mxu0 %v881
    %v993 = vpop.f32.mrf.mxu0
    %v994 = vadd.f32 %v836, %v993
    %995 = vmatmul.f32.gmra.mxu0 %v884
    %v996 = vpop.f32.mrf.mxu0
    %v997 = vadd.f32 %v837, %v996
    %998 = vdwg.mxu0
    %999 = vmax.xlane.f32.xlu0 %v952
    %v1000 = vpop.xlane.xlu0 %999
    %1001 = vmax.xlane.f32.xlu0 %v955
    %v1002 = vpop.xlane.xlu0 %1001
    %1003 = vmax.xlane.f32.xlu0 %v958
    %v1004 = vpop.xlane.xlu0 %1003
    %1005 = vmax.xlane.f32.xlu0 %v961
    %v1006 = vpop.xlane.xlu0 %1005
    %1007 = vmax.xlane.f32.xlu0 %v964
    %v1008 = vpop.xlane.xlu0 %1007
    %1009 = vmax.xlane.f32.xlu0 %v967
    %v1010 = vpop.xlane.xlu0 %1009
    %1011 = vmax.xlane.f32.xlu0 %v970
    %v1012 = vpop.xlane.xlu0 %1011
    %1013 = vmax.xlane.f32.xlu0 %v973
    %v1014 = vpop.xlane.xlu0 %1013
    %1015 = vmax.xlane.f32.xlu0 %v976
    %v1016 = vpop.xlane.xlu0 %1015
    %1017 = vmax.xlane.f32.xlu0 %v979
    %v1018 = vpop.xlane.xlu0 %1017
    %1019 = vmax.xlane.f32.xlu0 %v982
    %v1020 = vpop.xlane.xlu0 %1019
    %1021 = vmax.xlane.f32.xlu0 %v985
    %v1022 = vpop.xlane.xlu0 %1021
    %1023 = vmax.xlane.f32.xlu0 %v988
    %v1024 = vpop.xlane.xlu0 %1023
    %1025 = vmax.xlane.f32.xlu0 %v991
    %v1026 = vpop.xlane.xlu0 %1025
    %1027 = vmax.xlane.f32.xlu0 %v994
    %v1028 = vpop.xlane.xlu0 %1027
    %1029 = vmax.xlane.f32.xlu0 %v997
    %v1030 = vpop.xlane.xlu0 %1029
    %v1031 = vsub.f32 %v952, %v1000
    %v1032 = vsub.f32 %v955, %v1002
    %v1033 = vsub.f32 %v958, %v1004
    %v1034 = vsub.f32 %v961, %v1006
    %v1035 = vsub.f32 %v964, %v1008
    %v1036 = vsub.f32 %v967, %v1010
    %v1037 = vsub.f32 %v970, %v1012
    %v1038 = vsub.f32 %v973, %v1014
    %v1039 = vsub.f32 %v976, %v1016
    %v1040 = vsub.f32 %v979, %v1018
    %v1041 = vsub.f32 %v982, %v1020
    %v1042 = vsub.f32 %v985, %v1022
    %v1043 = vsub.f32 %v988, %v1024
    %v1044 = vsub.f32 %v991, %v1026
    %v1045 = vsub.f32 %v994, %v1028
    %v1046 = vsub.f32 %v997, %v1030
    %v1047 = vmul.f32 %v1031, 1.442695
    %v1048 = vpow.pop %v1047
    %v1049 = vmul.f32 %v1032, 1.442695
    %v1050 = vpow.pop %v1049
    %v1051 = vmul.f32 %v1033, 1.442695
    %v1052 = vpow.pop %v1051
    %v1053 = vmul.f32 %v1034, 1.442695
    %v1054 = vpow.pop %v1053
    %v1055 = vmul.f32 %v1035, 1.442695
    %v1056 = vpow.pop %v1055
    %v1057 = vmul.f32 %v1036, 1.442695
    %v1058 = vpow.pop %v1057
    %v1059 = vmul.f32 %v1037, 1.442695
    %v1060 = vpow.pop %v1059
    %v1061 = vmul.f32 %v1038, 1.442695
    %v1062 = vpow.pop %v1061
    %v1063 = vmul.f32 %v1039, 1.442695
    %v1064 = vpow.pop %v1063
    %v1065 = vmul.f32 %v1040, 1.442695
    %v1066 = vpow.pop %v1065
    %v1067 = vmul.f32 %v1041, 1.442695
    %v1068 = vpow.pop %v1067
    %v1069 = vmul.f32 %v1042, 1.442695
    %v1070 = vpow.pop %v1069
    %v1071 = vmul.f32 %v1043, 1.442695
    %v1072 = vpow.pop %v1071
    %v1073 = vmul.f32 %v1044, 1.442695
    %v1074 = vpow.pop %v1073
    %v1075 = vmul.f32 %v1045, 1.442695
    %v1076 = vpow.pop %v1075
    %v1077 = vmul.f32 %v1046, 1.442695
    %v1078 = vpow.pop %v1077
    %1079 = vadd.xlane.f32.xlu0 %v1048
    %v1080 = vpop.xlane.xlu0 %1079
    %1081 = vadd.xlane.f32.xlu0 %v1050
    %v1082 = vpop.xlane.xlu0 %1081
    %1083 = vadd.xlane.f32.xlu0 %v1052
    %v1084 = vpop.xlane.xlu0 %1083
    %1085 = vadd.xlane.f32.xlu0 %v1054
    %v1086 = vpop.xlane.xlu0 %1085
    %1087 = vadd.xlane.f32.xlu0 %v1056
    %v1088 = vpop.xlane.xlu0 %1087
    %1089 = vadd.xlane.f32.xlu0 %v1058
    %v1090 = vpop.xlane.xlu0 %1089
    %1091 = vadd.xlane.f32.xlu0 %v1060
    %v1092 = vpop.xlane.xlu0 %1091
    %1093 = vadd.xlane.f32.xlu0 %v1062
    %v1094 = vpop.xlane.xlu0 %1093
    %1095 = vadd.xlane.f32.xlu0 %v1064
    %v1096 = vpop.xlane.xlu0 %1095
    %1097 = vadd.xlane.f32.xlu0 %v1066
    %v1098 = vpop.xlane.xlu0 %1097
    %1099 = vadd.xlane.f32.xlu0 %v1068
    %v1100 = vpop.xlane.xlu0 %1099
    %1101 = vadd.xlane.f32.xlu0 %v1070
    %v1102 = vpop.xlane.xlu0 %1101
    %1103 = vadd.xlane.f32.xlu0 %v1072
    %v1104 = vpop.xlane.xlu0 %1103
    %1105 = vadd.xlane.f32.xlu0 %v1074
    %v1106 = vpop.xlane.xlu0 %1105
    %1107 = vadd.xlane.f32.xlu0 %v1076
    %v1108 = vpop.xlane.xlu0 %1107
    %1109 = vadd.xlane.f32.xlu0 %v1078
    %v1110 = vpop.xlane.xlu0 %1109
    %v1111 = vrcp.pop %v1080
    %v1112 = vrcp.pop %v1082
    %v1113 = vrcp.pop %v1084
    %v1114 = vrcp.pop %v1086
    %v1115 = vrcp.pop %v1088
    %v1116 = vrcp.pop %v1090
    %v1117 = vrcp.pop %v1092
    %v1118 = vrcp.pop %v1094
    %v1119 = vrcp.pop %v1096
    %v1120 = vrcp.pop %v1098
    %v1121 = vrcp.pop %v1100
    %v1122 = vrcp.pop %v1102
    %v1123 = vrcp.pop %v1104
    %v1124 = vrcp.pop %v1106
    %v1125 = vrcp.pop %v1108
    %v1126 = vrcp.pop %v1110
    %v1127 = vmul.f32 %v1048, %v1111
    %v1128 = vmul.f32 %v1050, %v1112
    %v1129 = vmul.f32 %v1052, %v1113
    %v1130 = vmul.f32 %v1054, %v1114
    %v1131 = vmul.f32 %v1056, %v1115
    %v1132 = vmul.f32 %v1058, %v1116
    %v1133 = vmul.f32 %v1060, %v1117
    %v1134 = vmul.f32 %v1062, %v1118
    %v1135 = vmul.f32 %v1064, %v1119
    %v1136 = vmul.f32 %v1066, %v1120
    %v1137 = vmul.f32 %v1068, %v1121
    %v1138 = vmul.f32 %v1070, %v1122
    %v1139 = vmul.f32 %v1072, %v1123
    %v1140 = vmul.f32 %v1074, %v1124
    %v1141 = vmul.f32 %v1076, %v1125
    %v1142 = vmul.f32 %v1078, %v1126
    %1143 = vmatpush.msra.mxu0 %v821
    %1144 = vmatpush.msra.mxu0 %v820
    %1145 = vmatpush.msra.mxu0 %v819
    %1146 = vmatpush.msra.mxu0 %v818
    %1147 = vmatpush.msra.mxu0 %v817
    %1148 = vmatpush.msra.mxu0 %v816
    %1149 = vmatpush.msra.mxu0 %v815
    %1150 = vmatpush.msra.mxu0 %v814
    %1151 = vmatpush.msra.mxu0 %v813
    %1152 = vmatpush.msra.mxu0 %v812
    %1153 = vmatpush.msra.mxu0 %v811
    %1154 = vmatpush.msra.mxu0 %v810
    %1155 = vmatpush.msra.mxu0 %v809
    %1156 = vmatpush.msra.mxu0 %v808
    %1157 = vmatpush.msra.mxu0 %v807
    %1158 = vmatpush.msra.mxu0 %v806
    %1159 = vmatmul.f32.gmra.mxu0 %v1127
    %v1160 = vpop.f32.mrf.mxu0
    %v1161 = vadd.f32 0.0, %v1160
    %1162 = vmatmul.f32.gmra.mxu0 %v1128
    %v1163 = vpop.f32.mrf.mxu0
    %v1164 = vadd.f32 0.0, %v1163
    %1165 = vmatmul.f32.gmra.mxu0 %v1129
    %v1166 = vpop.f32.mrf.mxu0
    %v1167 = vadd.f32 0.0, %v1166
    %1168 = vmatmul.f32.gmra.mxu0 %v1130
    %v1169 = vpop.f32.mrf.mxu0
    %v1170 = vadd.f32 0.0, %v1169
    %1171 = vmatmul.f32.gmra.mxu0 %v1131
    %v1172 = vpop.f32.mrf.mxu0
    %v1173 = vadd.f32 0.0, %v1172
    %1174 = vmatmul.f32.gmra.mxu0 %v1132
    %v1175 = vpop.f32.mrf.mxu0
    %v1176 = vadd.f32 0.0, %v1175
    %1177 = vmatmul.f32.gmra.mxu0 %v1133
    %v1178 = vpop.f32.mrf.mxu0
    %v1179 = vadd.f32 0.0, %v1178
    %1180 = vmatmul.f32.gmra.mxu0 %v1134
    %v1181 = vpop.f32.mrf.mxu0
    %v1182 = vadd.f32 0.0, %v1181
    %1183 = vmatmul.f32.gmra.mxu0 %v1135
    %v1184 = vpop.f32.mrf.mxu0
    %v1185 = vadd.f32 0.0, %v1184
    %1186 = vmatmul.f32.gmra.mxu0 %v1136
    %v1187 = vpop.f32.mrf.mxu0
    %v1188 = vadd.f32 0.0, %v1187
    %1189 = vmatmul.f32.gmra.mxu0 %v1137
    %v1190 = vpop.f32.mrf.mxu0
    %v1191 = vadd.f32 0.0, %v1190
    %1192 = vmatmul.f32.gmra.mxu0 %v1138
    %v1193 = vpop.f32.mrf.mxu0
    %v1194 = vadd.f32 0.0, %v1193
    %1195 = vmatmul.f32.gmra.mxu0 %v1139
    %v1196 = vpop.f32.mrf.mxu0
    %v1197 = vadd.f32 0.0, %v1196
    %1198 = vmatmul.f32.gmra.mxu0 %v1140
    %v1199 = vpop.f32.mrf.mxu0
    %v1200 = vadd.f32 0.0, %v1199
    %1201 = vmatmul.f32.gmra.mxu0 %v1141
    %v1202 = vpop.f32.mrf.mxu0
    %v1203 = vadd.f32 0.0, %v1202
    %1204 = vmatmul.f32.gmra.mxu0 %v1142
    %v1205 = vpop.f32.mrf.mxu0
    %v1206 = vadd.f32 0.0, %v1205
    %1207 = vdwg.mxu0
    %v1208 = vld [vmem:[%s3 + $0x80] sm:$0xff]
    %v1209 = vld [vmem:[%s3 + $0x88] sm:$0xff]
    %v1210 = vld [vmem:[%s3 + $0x90] sm:$0xff]
    %v1211 = vld [vmem:[%s3 + $0x98] sm:$0xff]
    %1212 = vmatpush.msra.mxu0 %v1206
    %1213 = vmatpush.msra.mxu0 %v1203
    %1214 = vmatpush.msra.mxu0 %v1200
    %1215 = vmatpush.msra.mxu0 %v1197
    %1216 = vmatpush.msra.mxu0 %v1194
    %1217 = vmatpush.msra.mxu0 %v1191
    %1218 = vmatpush.msra.mxu0 %v1188
    %1219 = vmatpush.msra.mxu0 %v1185
    %1220 = vmatpush.msra.mxu0 %v1182
    %1221 = vmatpush.msra.mxu0 %v1179
    %1222 = vmatpush.msra.mxu0 %v1176
    %1223 = vmatpush.msra.mxu0 %v1173
    %1224 = vmatpush.msra.mxu0 %v1170
    %1225 = vmatpush.msra.mxu0 %v1167
    %1226 = vmatpush.msra.mxu0 %v1164
    %1227 = vmatpush.msra.mxu0 %v1161
    %1228 = vmatmul.f32.gmra.mxu0 %v1208
    %v1229 = vpop.f32.mrf.mxu0
    %v1230 = vadd.f32 0.0, %v1229
    %1231 = vmatmul.f32.gmra.mxu0 %v1209
    %v1232 = vpop.f32.mrf.mxu0
    %v1233 = vadd.f32 0.0, %v1232
    %1234 = vmatmul.f32.gmra.mxu0 %v1210
    %v1235 = vpop.f32.mrf.mxu0
    %v1236 = vadd.f32 0.0, %v1235
    %1237 = vmatmul.f32.gmra.mxu0 %v1211
    %v1238 = vpop.f32.mrf.mxu0
    %v1239 = vadd.f32 0.0, %v1238
    %1240 = vdwg.mxu0
    %v1241 = vld [vmem:[%s1 + $0x80] sm:$0xff]
    %v1242 = vld [vmem:[%s1 + $0x88] sm:$0xff]
    %v1243 = vld [vmem:[%s1 + $0x90] sm:$0xff]
    %v1244 = vld [vmem:[%s1 + $0x98] sm:$0xff]
    %v1245 = vld [vmem:[%s2 + $0x4] sm:$0x1]
    %v1246 = vperm.slane %v1245, 0
    %v1248 = vsel %vm40, %v1230, 0
    %v1251 = vsel %vm40, %v1233, 0
    %v1254 = vsel %vm40, %v1236, 0
    %v1257 = vsel %vm40, %v1239, 0
    %1259 = vmatpush.msra.mxu0 0.0
    %1260 = vmatpush.msra.mxu0 0.0
    %1261 = vmatpush.msra.mxu0 0.0
    %1262 = vmatpush.msra.mxu0 0.0
    %1263 = vmatpush.msra.mxu0 0.0
    %1264 = vmatpush.msra.mxu0 0.0
    %1265 = vmatpush.msra.mxu0 0.0
    %1266 = vmatpush.msra.mxu0 0.0
    %1267 = vmatpush.msra.mxu0 0.0
    %1268 = vmatpush.msra.mxu0 0.0
    %1269 = vmatpush.msra.mxu0 0.0
    %1270 = vmatpush.msra.mxu0 0.0
    %1271 = vmatpush.msra.mxu0 %v1244
    %1272 = vmatpush.msra.mxu0 %v1243
    %1273 = vmatpush.msra.mxu0 %v1242
    %1274 = vmatpush.msra.mxu0 %v1241
    %1275 = vmatmul.f32.gmra.mxu0 %v1248
    %v1276 = vpop.f32.mrf.mxu0
    %v1277 = vadd.f32 %v1246, %v1276
    %1278 = vmatmul.f32.gmra.mxu0 %v1251
    %v1279 = vpop.f32.mrf.mxu0
    %v1280 = vadd.f32 %v1246, %v1279
    %1281 = vmatmul.f32.gmra.mxu0 %v1254
    %v1282 = vpop.f32.mrf.mxu0
    %v1283 = vadd.f32 %v1246, %v1282
    %1284 = vmatmul.f32.gmra.mxu0 %v1257
    %v1285 = vpop.f32.mrf.mxu0
    %v1286 = vadd.f32 %v1246, %v1285
    %1287 = vdwg.mxu0
    %v1288 = vld [vmem:[%s1 + $0xa0] sm:$0xff]
    %v1289 = vld [vmem:[%s1 + $0xa8] sm:$0xff]
    %v1290 = vld [vmem:[%s1 + $0xb0] sm:$0xff]
    %v1291 = vld [vmem:[%s1 + $0xb8] sm:$0xff]
    %v1292 = vld [vmem:[%s2 + $0x5] sm:$0x1]
    %v1293 = vperm.slane %v1292, 0
    %v1295 = vsel %vm40, %v1277, 0
    %v1298 = vsel %vm40, %v1280, 0
    %v1301 = vsel %vm40, %v1283, 0
    %v1304 = vsel %vm40, %v1286, 0
    %1306 = vmatpush.msra.mxu0 0.0
    %1307 = vmatpush.msra.mxu0 0.0
    %1308 = vmatpush.msra.mxu0 0.0
    %1309 = vmatpush.msra.mxu0 0.0
    %1310 = vmatpush.msra.mxu0 0.0
    %1311 = vmatpush.msra.mxu0 0.0
    %1312 = vmatpush.msra.mxu0 0.0
    %1313 = vmatpush.msra.mxu0 0.0
    %1314 = vmatpush.msra.mxu0 0.0
    %1315 = vmatpush.msra.mxu0 0.0
    %1316 = vmatpush.msra.mxu0 0.0
    %1317 = vmatpush.msra.mxu0 0.0
    %1318 = vmatpush.msra.mxu0 %v1291
    %1319 = vmatpush.msra.mxu0 %v1290
    %1320 = vmatpush.msra.mxu0 %v1289
    %1321 = vmatpush.msra.mxu0 %v1288
    %1322 = vmatmul.f32.gmra.mxu0 %v1295
    %v1323 = vpop.f32.mrf.mxu0
    %v1324 = vadd.f32 %v1293, %v1323
    %1325 = vmatmul.f32.gmra.mxu0 %v1298
    %v1326 = vpop.f32.mrf.mxu0
    %v1327 = vadd.f32 %v1293, %v1326
    %1328 = vmatmul.f32.gmra.mxu0 %v1301
    %v1329 = vpop.f32.mrf.mxu0
    %v1330 = vadd.f32 %v1293, %v1329
    %1331 = vmatmul.f32.gmra.mxu0 %v1304
    %v1332 = vpop.f32.mrf.mxu0
    %v1333 = vadd.f32 %v1293, %v1332
    %1334 = vdwg.mxu0
    %v1335 = vmul.f32 %v1324, 0.5
    %v1336 = vmul.f32 %v1327, 0.5
    %v1337 = vmul.f32 %v1330, 0.5
    %v1338 = vmul.f32 %v1333, 0.5
    %v1339 = vmul.f32 %v1324, 0.70710677
    %v1340 = vmul.f32 %v1327, 0.70710677
    %v1341 = vmul.f32 %v1330, 0.70710677
    %v1342 = vmul.f32 %v1333, 0.70710677
    %vm1343 = vcmp.ge.f32.partialorder %v1339, 0.0
    %vm1344 = vcmp.ge.f32.partialorder %v1340, 0.0
    %vm1345 = vcmp.ge.f32.partialorder %v1341, 0.0
    %vm1346 = vcmp.ge.f32.partialorder %v1342, 0.0
    %v1347 = vsel %vm1343, 1.0, -1.0
    %v1348 = vsel %vm1344, 1.0, -1.0
    %v1349 = vsel %vm1345, 1.0, -1.0
    %v1350 = vsel %vm1346, 1.0, -1.0
    %v1351 = vand.u32 2147483647, %v1339
    %v1352 = vand.u32 2147483647, %v1340
    %v1353 = vand.u32 2147483647, %v1341
    %v1354 = vand.u32 2147483647, %v1342
    %v1355 = vmul.f32 %v1351, 0.3275911
    %v1356 = vmul.f32 %v1352, 0.3275911
    %v1357 = vmul.f32 %v1353, 0.3275911
    %v1358 = vmul.f32 %v1354, 0.3275911
    %v1359 = vadd.f32 %v1355, 1.0
    %v1360 = vadd.f32 %v1356, 1.0
    %v1361 = vadd.f32 %v1357, 1.0
    %v1362 = vadd.f32 %v1358, 1.0
    %v1363 = vrcp.pop %v1359
    %v1364 = vrcp.pop %v1360
    %v1365 = vrcp.pop %v1361
    %v1366 = vrcp.pop %v1362
    %v1367 = vmul.f32 %v1363, 1.0614054
    %v1368 = vmul.f32 %v1364, 1.0614054
    %v1369 = vmul.f32 %v1365, 1.0614054
    %v1370 = vmul.f32 %v1366, 1.0614054
    %v1371 = vadd.f32 %v1367, -1.4531521
    %v1372 = vadd.f32 %v1368, -1.4531521
    %v1373 = vadd.f32 %v1369, -1.4531521
    %v1374 = vadd.f32 %v1370, -1.4531521
    %v1375 = vmul.f32 %v1363, %v1371
    %v1376 = vmul.f32 %v1364, %v1372
    %v1377 = vmul.f32 %v1365, %v1373
    %v1378 = vmul.f32 %v1366, %v1374
    %v1379 = vadd.f32 %v1375, 1.4214138
    %v1380 = vadd.f32 %v1376, 1.4214138
    %v1381 = vadd.f32 %v1377, 1.4214138
    %v1382 = vadd.f32 %v1378, 1.4214138
    %v1383 = vmul.f32 %v1363, %v1379
    %v1384 = vmul.f32 %v1364, %v1380
    %v1385 = vmul.f32 %v1365, %v1381
    %v1386 = vmul.f32 %v1366, %v1382
    %v1387 = vadd.f32 %v1383, -0.28449672
    %v1388 = vadd.f32 %v1384, -0.28449672
    %v1389 = vadd.f32 %v1385, -0.28449672
    %v1390 = vadd.f32 %v1386, -0.28449672
    %v1391 = vmul.f32 %v1363, %v1387
    %v1392 = vmul.f32 %v1364, %v1388
    %v1393 = vmul.f32 %v1365, %v1389
    %v1394 = vmul.f32 %v1366, %v1390
    %v1395 = vadd.f32 %v1391, 0.2548296
    %v1396 = vadd.f32 %v1392, 0.2548296
    %v1397 = vadd.f32 %v1393, 0.2548296
    %v1398 = vadd.f32 %v1394, 0.2548296
    %v1399 = vmul.f32 %v1363, %v1395
    %v1400 = vmul.f32 %v1364, %v1396
    %v1401 = vmul.f32 %v1365, %v1397
    %v1402 = vmul.f32 %v1366, %v1398
    %v1403 = vsub.f32 0.0, %v1351
    %v1404 = vsub.f32 0.0, %v1352
    %v1405 = vsub.f32 0.0, %v1353
    %v1406 = vsub.f32 0.0, %v1354
    %v1407 = vmul.f32 %v1403, %v1351
    %v1408 = vmul.f32 %v1404, %v1352
    %v1409 = vmul.f32 %v1405, %v1353
    %v1410 = vmul.f32 %v1406, %v1354
    %v1411 = vmul.f32 %v1407, 1.442695
    %v1412 = vpow.pop %v1411
    %v1413 = vmul.f32 %v1408, 1.442695
    %v1414 = vpow.pop %v1413
    %v1415 = vmul.f32 %v1409, 1.442695
    %v1416 = vpow.pop %v1415
    %v1417 = vmul.f32 %v1410, 1.442695
    %v1418 = vpow.pop %v1417
    %v1419 = vmul.f32 %v1399, %v1412
    %v1420 = vmul.f32 %v1400, %v1414
    %v1421 = vmul.f32 %v1401, %v1416
    %v1422 = vmul.f32 %v1402, %v1418
    %v1423 = vsub.f32 1.0, %v1419
    %v1424 = vsub.f32 1.0, %v1420
    %v1425 = vsub.f32 1.0, %v1421
    %v1426 = vsub.f32 1.0, %v1422
    %v1427 = vmul.f32 %v1347, %v1423
    %v1428 = vmul.f32 %v1348, %v1424
    %v1429 = vmul.f32 %v1349, %v1425
    %v1430 = vmul.f32 %v1350, %v1426
    %v1431 = vadd.f32 %v1427, 1.0
    %v1432 = vadd.f32 %v1428, 1.0
    %v1433 = vadd.f32 %v1429, 1.0
    %v1434 = vadd.f32 %v1430, 1.0
    %v1435 = vmul.f32 %v1335, %v1431
    %v1436 = vmul.f32 %v1336, %v1432
    %v1437 = vmul.f32 %v1337, %v1433
    %v1438 = vmul.f32 %v1338, %v1434
    %v1439 = vld [vmem:[%s3 + $0xa8] sm:$0xff]
    %v1440 = vld [vmem:[%s3 + $0xb0] sm:$0xff]
    %v1441 = vld [vmem:[%s3 + $0xb8] sm:$0xff]
    %v1442 = vld [vmem:[%s3 + $0xc0] sm:$0xff]
    %v1443 = vadd.f32 %v1435, %v1439
    %v1444 = vadd.f32 %v1436, %v1440
    %v1445 = vadd.f32 %v1437, %v1441
    %v1446 = vadd.f32 %v1438, %v1442
    %v1447 = vld [vmem:[%s1 + $0xc0] sm:$0xff]
    %v1448 = vld [vmem:[%s1 + $0xc8] sm:$0xff]
    %v1449 = vld [vmem:[%s1 + $0xd0] sm:$0xff]
    %v1450 = vld [vmem:[%s1 + $0xd8] sm:$0xff]
    %v1451 = vld [vmem:[%s2 + $0x6] sm:$0x1]
    %v1452 = vperm.slane %v1451, 0
    %v1454 = vsel %vm40, %v1443, 0
    %v1457 = vsel %vm40, %v1444, 0
    %v1460 = vsel %vm40, %v1445, 0
    %v1463 = vsel %vm40, %v1446, 0
    %1465 = vmatpush.msra.mxu0 0.0
    %1466 = vmatpush.msra.mxu0 0.0
    %1467 = vmatpush.msra.mxu0 0.0
    %1468 = vmatpush.msra.mxu0 0.0
    %1469 = vmatpush.msra.mxu0 0.0
    %1470 = vmatpush.msra.mxu0 0.0
    %1471 = vmatpush.msra.mxu0 0.0
    %1472 = vmatpush.msra.mxu0 0.0
    %1473 = vmatpush.msra.mxu0 0.0
    %1474 = vmatpush.msra.mxu0 0.0
    %1475 = vmatpush.msra.mxu0 0.0
    %1476 = vmatpush.msra.mxu0 0.0
    %1477 = vmatpush.msra.mxu0 %v1450
    %1478 = vmatpush.msra.mxu0 %v1449
    %1479 = vmatpush.msra.mxu0 %v1448
    %1480 = vmatpush.msra.mxu0 %v1447
    %1481 = vmatmul.f32.gmra.mxu0 %v1454
    %v1482 = vpop.f32.mrf.mxu0
    %v1483 = vadd.f32 %v1452, %v1482
    %1484 = vmatmul.f32.gmra.mxu0 %v1457
    %v1485 = vpop.f32.mrf.mxu0
    %v1486 = vadd.f32 %v1452, %v1485
    %1487 = vmatmul.f32.gmra.mxu0 %v1460
    %v1488 = vpop.f32.mrf.mxu0
    %v1489 = vadd.f32 %v1452, %v1488
    %1490 = vmatmul.f32.gmra.mxu0 %v1463
    %v1491 = vpop.f32.mrf.mxu0
    %v1492 = vadd.f32 %v1452, %v1491
    %1493 = vdwg.mxu0
    %v1494 = vld [vmem:[%s3 + $0xc8] sm:$0xff]
    %v1495 = vld [vmem:[%s3 + $0xd0] sm:$0xff]
    %v1496 = vld [vmem:[%s3 + $0xd8] sm:$0xff]
    %v1497 = vld [vmem:[%s3 + $0xe0] sm:$0xff]
    %v1498 = vadd.f32 %v1483, %v1494
    %v1499 = vadd.f32 %v1486, %v1495
    %v1500 = vadd.f32 %v1489, %v1496
    %v1501 = vadd.f32 %v1492, %v1497
    %v1502 = vsel %vm40, %v1498, 0.0
    %1503 = vadd.xlane.f32.xlu0 %v1502
    %v1504 = vpop.xlane.xlu0 %1503
    %v1505 = vsel %vm40, %v1499, 0.0
    %1506 = vadd.xlane.f32.xlu0 %v1505
    %v1507 = vpop.xlane.xlu0 %1506
    %v1508 = vsel %vm40, %v1500, 0.0
    %1509 = vadd.xlane.f32.xlu0 %v1508
    %v1510 = vpop.xlane.xlu0 %1509
    %v1511 = vsel %vm40, %v1501, 0.0
    %1512 = vadd.xlane.f32.xlu0 %v1511
    %v1513 = vpop.xlane.xlu0 %1512
    %v1514 = vmul.f32 %v1504, %v208
    %v1515 = vmul.f32 %v1507, %v208
    %v1516 = vmul.f32 %v1510, %v208
    %v1517 = vmul.f32 %v1513, %v208
    %v1518 = vsub.f32 %v1498, %v1514
    %v1519 = vsub.f32 %v1499, %v1515
    %v1520 = vsub.f32 %v1500, %v1516
    %v1521 = vsub.f32 %v1501, %v1517
    %v1522 = vmul.f32 %v1518, %v1518
    %v1523 = vmul.f32 %v1519, %v1519
    %v1524 = vmul.f32 %v1520, %v1520
    %v1525 = vmul.f32 %v1521, %v1521
    %v1526 = vsel %vm40, %v1522, 0.0
    %1527 = vadd.xlane.f32.xlu0 %v1526
    %v1528 = vpop.xlane.xlu0 %1527
    %v1529 = vsel %vm40, %v1523, 0.0
    %1530 = vadd.xlane.f32.xlu0 %v1529
    %v1531 = vpop.xlane.xlu0 %1530
    %v1532 = vsel %vm40, %v1524, 0.0
    %1533 = vadd.xlane.f32.xlu0 %v1532
    %v1534 = vpop.xlane.xlu0 %1533
    %v1535 = vsel %vm40, %v1525, 0.0
    %1536 = vadd.xlane.f32.xlu0 %v1535
    %v1537 = vpop.xlane.xlu0 %1536
    %v1538 = vmul.f32 %v1528, %v208
    %v1539 = vmul.f32 %v1531, %v208
    %v1540 = vmul.f32 %v1534, %v208
    %v1541 = vmul.f32 %v1537, %v208
    %v1542 = vadd.f32 %v1538, 1e-05
    %v1543 = vadd.f32 %v1539, 1e-05
    %v1544 = vadd.f32 %v1540, 1e-05
    %v1545 = vadd.f32 %v1541, 1e-05
    %v1546 = vrsqrt.pop %v1542
    %v1547 = vmul.f32 %v1546, %v1542
    %v1548 = vmul.f32 %v1547, %v1546
    %v1549 = vmul.f32 0.5, %v1548
    %v1550 = vsub.f32 1.5, %v1549
    %v1551 = vmul.f32 %v1546, %v1550
    %vm1552 = vweird.f32 %v1542
    %vm1553 = vweird.f32 %v1546
    %vm1554 = vmor %vm1552, %vm1553
    %v1555 = vsel %vm1554, %v1546, %v1551
    %v1556 = vrsqrt.pop %v1543
    %v1557 = vmul.f32 %v1556, %v1543
    %v1558 = vmul.f32 %v1557, %v1556
    %v1559 = vmul.f32 0.5, %v1558
    %v1560 = vsub.f32 1.5, %v1559
    %v1561 = vmul.f32 %v1556, %v1560
    %vm1562 = vweird.f32 %v1543
    %vm1563 = vweird.f32 %v1556
    %vm1564 = vmor %vm1562, %vm1563
    %v1565 = vsel %vm1564, %v1556, %v1561
    %v1566 = vrsqrt.pop %v1544
    %v1567 = vmul.f32 %v1566, %v1544
    %v1568 = vmul.f32 %v1567, %v1566
    %v1569 = vmul.f32 0.5, %v1568
    %v1570 = vsub.f32 1.5, %v1569
    %v1571 = vmul.f32 %v1566, %v1570
    %vm1572 = vweird.f32 %v1544
    %vm1573 = vweird.f32 %v1566
    %vm1574 = vmor %vm1572, %vm1573
    %v1575 = vsel %vm1574, %v1566, %v1571
    %v1576 = vrsqrt.pop %v1545
    %v1577 = vmul.f32 %v1576, %v1545
    %v1578 = vmul.f32 %v1577, %v1576
    %v1579 = vmul.f32 0.5, %v1578
    %v1580 = vsub.f32 1.5, %v1579
    %v1581 = vmul.f32 %v1576, %v1580
    %vm1582 = vweird.f32 %v1545
    %vm1583 = vweird.f32 %v1576
    %vm1584 = vmor %vm1582, %vm1583
    %v1585 = vsel %vm1584, %v1576, %v1581
    %v1586 = vmul.f32 %v1518, %v1555
    %v1587 = vmul.f32 %v1519, %v1565
    %v1588 = vmul.f32 %v1520, %v1575
    %v1589 = vmul.f32 %v1521, %v1585
    %v1590 = vld [vmem:[%s3 + $0xa0] sm:$0x3]
    %v1592 = vsel %vm40, %v1590, 0
    %1594 = vmatpush.msra.mxu0 0.0
    %1595 = vmatpush.msra.mxu0 0.0
    %1596 = vmatpush.msra.mxu0 0.0
    %1597 = vmatpush.msra.mxu0 0.0
    %1598 = vmatpush.msra.mxu0 0.0
    %1599 = vmatpush.msra.mxu0 0.0
    %1600 = vmatpush.msra.mxu0 0.0
    %1601 = vmatpush.msra.mxu0 0.0
    %1602 = vmatpush.msra.mxu0 0.0
    %1603 = vmatpush.msra.mxu0 0.0
    %1604 = vmatpush.msra.mxu0 0.0
    %1605 = vmatpush.msra.mxu0 0.0
    %1606 = vmatpush.msra.mxu0 %v1589
    %1607 = vmatpush.msra.mxu0 %v1588
    %1608 = vmatpush.msra.mxu0 %v1587
    %1609 = vmatpush.msra.mxu0 %v1586
    %1610 = vmatmul.f32.gmra.mxu0 %v1592
    %v1611 = vpop.f32.mrf.mxu0
    %v1612 = vadd.f32 0.0, %v1611
    %1613 = vdwg.mxu0
    %v1614 = vld [vmem:[%s1 + $0xe0] sm:$0xff]
    %v1615 = vld [vmem:[%s1 + $0xe8] sm:$0xff]
    %v1616 = vld [vmem:[%s1 + $0xf0] sm:$0xff]
    %v1617 = vld [vmem:[%s1 + $0xf8] sm:$0xff]
    %v1618 = vld [vmem:[%s2 + $0x7] sm:$0x1]
    %v1619 = vperm.slane %v1618, 0
    %v1621 = vsel %vm40, %v1612, 0
    %1623 = vmatpush.msra.mxu0 0.0
    %1624 = vmatpush.msra.mxu0 0.0
    %1625 = vmatpush.msra.mxu0 0.0
    %1626 = vmatpush.msra.mxu0 0.0
    %1627 = vmatpush.msra.mxu0 0.0
    %1628 = vmatpush.msra.mxu0 0.0
    %1629 = vmatpush.msra.mxu0 0.0
    %1630 = vmatpush.msra.mxu0 0.0
    %1631 = vmatpush.msra.mxu0 0.0
    %1632 = vmatpush.msra.mxu0 0.0
    %1633 = vmatpush.msra.mxu0 0.0
    %1634 = vmatpush.msra.mxu0 0.0
    %1635 = vmatpush.msra.mxu0 %v1617
    %1636 = vmatpush.msra.mxu0 %v1616
    %1637 = vmatpush.msra.mxu0 %v1615
    %1638 = vmatpush.msra.mxu0 %v1614
    %1639 = vmatmul.f32.gmra.mxu0 %v1621
    %v1640 = vpop.f32.mrf.mxu0
    %v1641 = vadd.f32 %v1619, %v1640
    %1642 = vdwg.mxu0
    %1643 = vst [vmem:[#allocation2] sm:$0x3] %v1641
    // Predicated region
    $region18: #{mha_forward.1} parent=1 // pred_check
      _
    $region19: #{mha_forward.1} parent=1 // pred_check_branch
      %1645 = sbr.rel (0) target = $region21
    $region20: #{mha_forward.1} parent=1 // pred_region
      %1647 = vsyncadd [#allocation3], 0
      %s1649 = sshll.u32 [#allocation2], 4
      %s1650 = int_to_ptr.vmem [resolvable:$true] %s1649
      %s1651 = sshll.u32 %s4, 4
      %s1652 = int_to_ptr.hbm [resolvable:$true] %s1651
      %1654 = dma.vmem_to_hbm [thread:$0]  %s1650, 32, %s1652, [#allocation3]
    $region21: #{mha_forward.1} parent=1 // pred_fallthru
      _
    // Predicated region
    $region22: #{mha_forward.1} parent=1 // pred_check
      _
    $region23: #{mha_forward.1} parent=1 // pred_check_branch
      %1656 = sbr.rel (0) target = $region25
    $region24: #{mha_forward.1} parent=1 // pred_region
      %1658 = dma.done [#allocation3], 32
    $region25: #{mha_forward.1} parent=1 // pred_fallthru
      _
    %1659 = vsyncpa [#allocation3], 1

</llo_original>
